<compile_context>
chip_gen: v6e
topology: v6e:2x2x1
jax: 0.10.0
libtpu: 0.0.40
codegen_flags: <defaults>
</compile_context>

<pallas_src>
import math

import numpy as np

import jax
import jax.numpy as jnp
from jax.experimental import pallas as pl
from jax.experimental.pallas import tpu as pltpu

BN_EPS = 1e-5


# ----------------------------------------------------------------------------
# helpers
# ----------------------------------------------------------------------------
def _round_up(x, m):
    return (x + m - 1) // m * m


def _pad2(a, rows, cols):
    return jnp.pad(a, ((0, rows - a.shape[0]), (0, cols - a.shape[1])))


def _pad_vec(v, dp, fill):
    # v: (1, d) -> (1, dp), padded with `fill`
    d = v.shape[1]
    v = v.astype(jnp.float32)
    if d == dp:
        return v
    pad = jnp.full((1, dp - d), fill, jnp.float32)
    return jnp.concatenate([v, pad], axis=1)


def _pack_params(params, num_mlp_layers, dp):
    """Stack weights -> (L, M*Dp, Dp) bf16 and vectors -> (L, 3M, Dp) f32.

    Per-layer vector row order: bias_m at row 3m; inner gamma_m/beta_m at rows
    3m+1 / 3m+2 (only for m < M-1); outer gamma/beta at rows 3(M-1)+1 / +2.
    """
    m_layers = num_mlp_layers
    w_layers, v_layers = [], []
    for p in params:
        ws, rows = [], []
        for m in range(m_layers):
            w, b = p["linears"][m]
            ws.append(_pad2(w.astype(jnp.float32), dp, dp))
            rows.append(_pad_vec(b, dp, 0.0))
            if m < m_layers - 1:
                g, be = p["mlp_bns"][m]
                rows.append(_pad_vec(g, dp, 1.0))
                rows.append(_pad_vec(be, dp, 0.0))
        rows.append(_pad_vec(p["bn_gamma"], dp, 1.0))
        rows.append(_pad_vec(p["bn_beta"], dp, 0.0))
        w_layers.append(jnp.concatenate(ws, axis=0))      # (M*Dp, Dp)
        v_layers.append(jnp.concatenate(rows, axis=0))    # (3M, Dp)
    w_stack = jnp.stack(w_layers, axis=0).astype(jnp.bfloat16)
    v_stack = jnp.stack(v_layers, axis=0).astype(jnp.float32)
    return w_stack, v_stack


def _vmem_budget_bytes():
    """~75% of the device's VMEM capacity (falls back to a 64 MiB chip)."""
    try:
        info = pltpu.get_tpu_info()
        cap = getattr(info, "vmem_capacity_bytes", None)
        if not cap:
            cap = 128 * 1024 * 1024
    except Exception:
        cap = 64 * 1024 * 1024        # conservative (v7x-sized) fallback
    return int(cap) * 3 // 4


def _estimate_vmem(np_pad, dp, bp, m_layers, tm, wk, abytes):
    """Rough resident-VMEM estimate (double-buffered streamed blocks)."""
    byt = 0
    byt += np_pad * dp * 2                     # resident h (bf16 scratch)
    byt += np_pad * dp * 4                     # post-linear-0 accumulator (f32)
    byt += 2 * np_pad * dp * 4                 # h_nodes output block
    byt += 2 * bp * dp * 4                     # pooled output block
    byt += 2 * m_layers * dp * dp * 2          # stacked weights (bf16)
    byt += 2 * max(3 * m_layers, 8) * dp * 4   # packed bias/gamma/beta
    byt += 2 * bp * np_pad * 2                 # graph pooling matrix (bf16)
    byt += 2 * tm * wk * abytes                # adjacency tiles
    byt += 4 * np_pad * dp * 4                 # epilogue temporaries
    return byt


# ----------------------------------------------------------------------------
# fused kernel: all GIN layers + graph pooling in one pallas_call
# ----------------------------------------------------------------------------
def make_graphcnn_kernel(num_gin_layers, num_mlp_layers, n_true, np_pad, dp,
                         tm, wk, num_i, need_mask):
    L = num_gin_layers
    M = num_mlp_layers
    inv_n = 1.0 / float(n_true)

    def row_mask_f32():
        rows = jax.lax.broadcasted_iota(jnp.int32, (np_pad, 1), 0)
        return (rows < n_true).astype(jnp.float32)

    def bn_relu(z, gamma, beta, mask):
        # BatchNorm1d (training mode, biased variance, eps=1e-5) over the TRUE
        # rows only.  Two-pass (centered) variance for numerical safety.
        if mask is not None:
            mean = jnp.sum(z * mask, axis=0, keepdims=True) * inv_n
            d = (z - mean) * mask
            var = jnp.sum(d * d, axis=0, keepdims=True) * inv_n
        else:
            mean = jnp.mean(z, axis=0, keepdims=True)
            d = z - mean
            var = jnp.mean(d * d, axis=0, keepdims=True)
        zn = (z - mean) * jax.lax.rsqrt(var + BN_EPS) * gamma + beta
        return jnp.maximum(zn, 0.0)

    def kernel(c_ref, x_hbm, adj_ref, w_ref, p_ref, gp_ref,
               pooled_ref, h_nodes_ref, h_buf, acc):
        layer = pl.program_id(0)
        i = pl.program_id(1)

        # One-time load of the node features into the resident h buffer.
        @pl.when((layer == 0) & (i == 0))
        def _():
            pltpu.sync_copy(x_hbm, h_buf)

        # --- neighborhood aggregation over this row strip's non-zero column
        #     window (block-diagonal adjacency: everything outside the window
        #     is zero, so it is neither DMA'd nor multiplied).
        cstart = pl.multiple_of(c_ref[i] * wk, wk)
        adj_t = adj_ref[...].astype(jnp.float32).astype(jnp.bfloat16)
        pooled = jnp.dot(adj_t, h_buf[pl.ds(cstart, wk), :],
                         preferred_element_type=jnp.float32)

        # --- row-local first MLP linear, done per strip so it overlaps the
        #     next strip's adjacency DMA.  acc holds z after linear 0.
        w0 = w_ref[0, 0:dp, :]
        b0 = p_ref[0, 0:1, :]
        row = pl.multiple_of(i * tm, tm)
        acc[pl.ds(row, tm), :] = (
            jnp.dot(pooled.astype(jnp.bfloat16), w0,
                    preferred_element_type=jnp.float32) + b0)

        # --- layer epilogue: batch-norm statistics couple all rows, so the
        #     remaining MLP layers / BN / ReLU run once per layer.
        @pl.when(i == num_i - 1)
        def _():
            mask = row_mask_f32() if need_mask else None
            z = acc[...]                                    # (Np, Dp) f32
            for m in range(1, M):
                g = p_ref[0, 3 * (m - 1) + 1:3 * (m - 1) + 2, :]
                be = p_ref[0, 3 * (m - 1) + 2:3 * (m - 1) + 3, :]
                z = bn_relu(z, g, be, mask)
                w = w_ref[0, m * dp:(m + 1) * dp, :]
                b = p_ref[0, 3 * m:3 * m + 1, :]
                z = jnp.dot(z.astype(jnp.bfloat16), w,
                            preferred_element_type=jnp.float32) + b
            # outer BatchNorm1d + ReLU (GraphCNN.next_layer)
            g = p_ref[0, 3 * (M - 1) + 1:3 * (M - 1) + 2, :]
            be = p_ref[0, 3 * (M - 1) + 2:3 * (M - 1) + 3, :]
            z = bn_relu(z, g, be, mask)

            # New h kept resident in VMEM (bf16 for the MXU).  Padded rows of
            # h_buf carry harmless garbage: they are only ever multiplied by
            # zero adjacency / graph-pool columns and never emitted unmasked.
            h_buf[...] = z.astype(jnp.bfloat16)

            # final layer: emit node features and fused graph pooling
            @pl.when(layer == L - 1)
            def _():
                if need_mask:
                    h_nodes_ref[...] = z * mask
                else:
                    h_nodes_ref[...] = z
                pooled_ref[...] = jnp.dot(
                    gp_ref[...], z.astype(jnp.bfloat16),
                    preferred_element_type=jnp.float32)

    return kernel


# ----------------------------------------------------------------------------
# wrapper
# ----------------------------------------------------------------------------
def graphcnn_forward(params, x, graph_pool, adj, num_mlp_layers, tm=None):
    n, in_dim = x.shape
    b = graph_pool.shape[0]
    num_gin_layers = len(params)
    assert num_gin_layers >= 1
    M = num_mlp_layers
    hidden_dim = params[-1]["bn_gamma"].shape[1]

    dp = _round_up(max(in_dim, hidden_dim), 128)   # lane-dense feature width
    bp = _round_up(b, 16)

    # Concrete adjacency? (enables int8 HBM storage + block-diagonal windows)
    try:
        adj_host = np.asarray(adj)
        concrete = True
    except Exception:                               # traced inside jit
        adj_host, concrete = None, False

    budget = _vmem_budget_bytes()

    # --- row-strip size ------------------------------------------------------
    if tm is None:
        np_res = _round_up(n, 128)
        est = _estimate_vmem(np_res, dp, bp, M, np_res, np_res, 2)
        if est <= int(budget * 0.9):
            tm_eff = np_res          # fully-resident adjacency, single strip
        else:
            tm_eff = 512             # streamed row strips (>=512-wide tiles)
    else:
        tm_eff = _round_up(max(int(tm), 128), 128)
    np_pad = _round_up(n, tm_eff)
    num_i = np_pad // tm_eff
    need_mask = (np_pad != n)

    # --- adjacency storage dtype (int8 in HBM when exactly integer-valued) ---
    use_int8 = False
    if concrete:
        use_int8 = bool(np.all(adj_host == np.round(adj_host)) and
                        np.all(np.abs(adj_host) <= 127))
    adj_dtype = jnp.int8 if use_int8 else jnp.bfloat16
    abytes = 1 if use_int8 else 2

    # --- block-diagonal column windows per row strip --------------------------
    if concrete and num_i > 1:
        col_lo = np.zeros(num_i, np.int64)
        col_hi = np.zeros(num_i, np.int64)
        nzmask = adj_host != 0
        for ii in range(num_i):
            r0, r1 = ii * tm_eff, min((ii + 1) * tm_eff, n)
            if r1 > r0:
                cols = np.nonzero(nzmask[r0:r1, :].any(axis=0))[0]
                if cols.size:
                    col_lo[ii] = int(cols[0])
                    col_hi[ii] = int(cols[-1]) + 1
        wk = np_pad
        for cand in range(128, np_pad + 1, 128):
            if np_pad % cand:
                continue
            if all((col_lo[ii] // cand) * cand + cand >= col_hi[ii]
                   for ii in range(num_i)):
                wk = cand
                break
        c_blk = (col_lo // wk).astype(np.int32)
    else:
        wk = np_pad
        c_blk = np.zeros((num_i,), np.int32)
    c_blk = jnp.asarray(c_blk)

    # --- pad + cast the operands (bf16/int8 MXU inputs, f32 accumulation) ----
    xb = _pad2(x.astype(jnp.float32), np_pad, dp).astype(jnp.bfloat16)
    adjb = _pad2(adj.astype(jnp.float32), np_pad, np_pad).astype(adj_dtype)
    gpb = _pad2(graph_pool.astype(jnp.float32), bp, np_pad).astype(jnp.bfloat16)
    w_stack, v_stack = _pack_params(params, M, dp)

    kernel = make_graphcnn_kernel(num_gin_layers, M, n, np_pad, dp,
                                  tm_eff, wk, num_i, need_mask)

    vmem_limit = int(max(32 * 1024 * 1024, min(budget, 100 * 1024 * 1024)))

    pooled_p, h_nodes_p = pl.pallas_call(
        kernel,
        out_shape=(jax.ShapeDtypeStruct((bp, dp), jnp.float32),
                   jax.ShapeDtypeStruct((np_pad, dp), jnp.float32)),
        grid_spec=pltpu.PrefetchScalarGridSpec(
            num_scalar_prefetch=1,
            grid=(num_gin_layers, num_i),
            in_specs=[
                # node features: raw ref, copied once into the resident h
                pl.BlockSpec(memory_space=pl.ANY),
                # adjacency row-strip window (resident when num_i == 1)
                pl.BlockSpec((tm_eff, wk), lambda l, i, c: (i, c[i])),
                # stacked MLP weights: one block per layer
                pl.BlockSpec((1, M * dp, dp), lambda l, i, c: (l, 0, 0)),
                # packed bias / gamma / beta vectors: one block per layer
                pl.BlockSpec((1, 3 * M, dp), lambda l, i, c: (l, 0, 0)),
                # graph pooling matrix: resident
                pl.BlockSpec((bp, np_pad), lambda l, i, c: (0, 0)),
            ],
            out_specs=(
                pl.BlockSpec((bp, dp), lambda l, i, c: (0, 0)),
                pl.BlockSpec((np_pad, dp), lambda l, i, c: (0, 0)),
            ),
            scratch_shapes=[
                pltpu.VMEM((np_pad, dp), jnp.bfloat16),   # resident h
                pltpu.VMEM((np_pad, dp), jnp.float32),    # z after linear 0
            ],
        ),
        compiler_params=pltpu.CompilerParams(
            # Layers are sequential and BN couples all row strips.
            dimension_semantics=("arbitrary", "arbitrary"),
            vmem_limit_bytes=vmem_limit,
        ),
    )(c_blk, xb, adjb, w_stack, v_stack, gpb)

    pooled_h = pooled_p[:b, :hidden_dim]
    h_nodes = h_nodes_p[:n, :hidden_dim]
    return pooled_h, h_nodes


# ----------------------------------------------------------------------------
# deterministic parameter init (shapes match the nn.Module)
# ----------------------------------------------------------------------------
def init_params(key, num_layers, num_mlp_layers, input_dim, hidden_dim):
    params = []
    for layer in range(num_layers - 1):
        in_dim = input_dim if layer == 0 else hidden_dim
        linears, mlp_bns = [], []
        dims_in = [in_dim] + [hidden_dim] * (num_mlp_layers - 1)
        dims_out = [hidden_dim] * num_mlp_layers
        for i in range(num_mlp_layers):
            key, kw, kb = jax.random.split(key, 3)
            # stored pre-transposed as (in, out) so the kernel does z @ W
            w = jax.random.uniform(kw, (dims_in[i], dims_out[i]),
                                   jnp.float32, minval=-0.1, maxval=0.1)
            bb = jax.random.uniform(kb, (1, dims_out[i]),
                                    jnp.float32, minval=-0.1, maxval=0.1)
            linears.append((w, bb))
            if i < num_mlp_layers - 1:
                mlp_bns.append((jnp.ones((1, dims_out[i]), jnp.float32),
                                jnp.zeros((1, dims_out[i]), jnp.float32)))
        params.append(dict(
            linears=linears,
            mlp_bns=mlp_bns,
            bn_gamma=jnp.ones((1, hidden_dim), jnp.float32),
            bn_beta=jnp.zeros((1, hidden_dim), jnp.float32),
        ))
    return params


# ----------------------------------------------------------------------------
# pure-JAX reference (bf16 matmul operands / f32 accumulation, like the kernel)
# ----------------------------------------------------------------------------
def _ref_bn(z, g, bta):
    m = jnp.mean(z, axis=0, keepdims=True)
    v = jnp.mean((z - m) ** 2, axis=0, keepdims=True)
    return (z - m) * jax.lax.rsqrt(v + BN_EPS) * g + bta


def reference_forward(params, x, graph_pool, adj, num_mlp_layers):
    bf = jnp.bfloat16
    h = x
    for p in params:
        pooled = jnp.dot(adj.astype(bf), h.astype(bf),
                         preferred_element_type=jnp.float32)
        z = pooled
        for m in range(num_mlp_layers):
            w, bb = p["linears"][m]
            z = jnp.dot(z.astype(bf), w.astype(bf),
                        preferred_element_type=jnp.float32) + bb
            if m < num_mlp_layers - 1:
                g, be = p["mlp_bns"][m]
                z = jnp.maximum(_ref_bn(z, g, be), 0.0)
        h = jnp.maximum(_ref_bn(z, p["bn_gamma"], p["bn_beta"]), 0.0)
    pooled_h = jnp.dot(graph_pool.astype(bf), h.astype(bf),
                       preferred_element_type=jnp.float32)
    return pooled_h, h


# ----------------------------------------------------------------------------
if __name__ == "__main__":
    num_layers = 3          # -> 2 GIN layers
    num_mlp_layers = 2
    input_dim = 10
    hidden_dim = 32

    def make_graph_batch(n_graphs, nodes_per_graph, edge_w):
        n = n_graphs * nodes_per_graph
        adj_np = np.zeros((n, n), np.float32)
        gp_np = np.zeros((n_graphs, n), np.float32)
        for g in range(n_graphs):
            base = g * nodes_per_graph
            for v in range(nodes_per_graph):
                u = base + v
                w = base + (v + 1) % nodes_per_graph
                adj_np[u, w] = edge_w
                adj_np[w, u] = edge_w
                adj_np[u, u] = 1.0
            gp_np[g, base:base + nodes_per_graph] = 1.0 / nodes_per_graph
        return jnp.asarray(adj_np), jnp.asarray(gp_np)

    key = jax.random.PRNGKey(0)

    # ---- case A: auto config (fully resident adjacency), weighted adj (bf16),
    #      padded rows exercise the masked BatchNorm path (200 -> 256).
    nA = 4 * 50
    key, kx, kp = jax.random.split(key, 3)
    xA = jax.random.normal(kx, (nA, input_dim), jnp.float32)
    adjA, gpA = make_graph_batch(4, 50, edge_w=0.5)
    paramsA = init_params(kp, num_layers, num_mlp_layers, input_dim, hidden_dim)

    pooledA, nodesA = graphcnn_forward(paramsA, xA, gpA, adjA, num_mlp_layers)
    jax.block_until_ready((pooledA, nodesA))
    refA_p, refA_n = reference_forward(paramsA, xA, gpA, adjA, num_mlp_layers)
    assert pooledA.shape == (4, hidden_dim) and nodesA.shape == (nA, hidden_dim)
    assert jnp.allclose(pooledA, refA_p, atol=5e-3, rtol=5e-3), \
        float(jnp.max(jnp.abs(pooledA - refA_p)))
    assert jnp.allclose(nodesA, refA_n, atol=5e-3, rtol=5e-3), \
        float(jnp.max(jnp.abs(nodesA - refA_n)))

    # ---- case B: streamed row strips (tm=128), block-diagonal column windows
    #      via scalar prefetch, int8 adjacency storage (binary edges).
    nB = 4 * 64
    key, kx, kp = jax.random.split(key, 3)
    xB = jax.random.normal(kx, (nB, input_dim), jnp.float32)
    adjB, gpB = make_graph_batch(4, 64, edge_w=1.0)
    paramsB = init_params(kp, num_layers, num_mlp_layers, input_dim, hidden_dim)

    pooledB, nodesB = graphcnn_forward(paramsB, xB, gpB, adjB, num_mlp_layers,
                                       tm=128)
    jax.block_until_ready((pooledB, nodesB))
    refB_p, refB_n = reference_forward(paramsB, xB, gpB, adjB, num_mlp_layers)
    assert pooledB.shape == (4, hidden_dim) and nodesB.shape == (nB, hidden_dim)
    assert jnp.allclose(pooledB, refB_p, atol=5e-3, rtol=5e-3), \
        float(jnp.max(jnp.abs(pooledB - refB_p)))
    assert jnp.allclose(nodesB, refB_n, atol=5e-3, rtol=5e-3), \
        float(jnp.max(jnp.abs(nodesB - refB_n)))

    print("KERNEL_OK")
</pallas_src>

<mosaic_0001>
module attributes {stable_mosaic.version = 11 : i64} {
  func.func @kernel(%arg0: i32, %arg1: i32, %arg2: memref<1xi32, #tpu.memory_space<smem>>, %arg3: memref<256x128xbf16, #tpu.memory_space<any>>, %arg4: memref<256x256xbf16, #tpu.memory_space<vmem>>, %arg5: memref<1x256x128xbf16, #tpu.memory_space<vmem>>, %arg6: memref<1x6x128xf32, #tpu.memory_space<vmem>>, %arg7: memref<16x256xbf16, #tpu.memory_space<vmem>>, %arg8: memref<16x128xf32, #tpu.memory_space<vmem>>, %arg9: memref<256x128xf32, #tpu.memory_space<vmem>>, %arg10: memref<256x128xbf16, #tpu.memory_space<vmem>>, %arg11: memref<256x128xf32, #tpu.memory_space<vmem>>) attributes {dimension_semantics = [#tpu.dimension_semantics<arbitrary>, #tpu.dimension_semantics<arbitrary>], iteration_bounds = array<i64: 2, 1>, scalar_prefetch = 1 : i64, scratch_operands = 2 : i64, tpu.core_type = #tpu.core_type<tc>, window_params = [{}, {transform_indices = @transform_1, window_bounds = array<i64: 256, 256>}, {transform_indices = @transform_2, window_bounds = array<i64: 1, 256, 128>}, {transform_indices = @transform_3, window_bounds = array<i64: 1, 6, 128>}, {pipeline_mode = #tpu.pipeline_mode<synchronous>, transform_indices = @transform_4, window_bounds = array<i64: 16, 256>}, {pipeline_mode = #tpu.pipeline_mode<synchronous>, transform_indices = @transform_5, window_bounds = array<i64: 16, 128>}, {pipeline_mode = #tpu.pipeline_mode<synchronous>, transform_indices = @transform_6, window_bounds = array<i64: 256, 128>}]} {
    %c0_i32 = arith.constant 0 : i32
    %0 = arith.cmpi eq, %arg0, %c0_i32 : i32
    %c0_i32_0 = arith.constant 0 : i32
    %1 = arith.cmpi eq, %arg1, %c0_i32_0 : i32
    %2 = arith.andi %0, %1 : i1
    %3 = arith.extui %2 : i1 to i32
    %c0_i32_1 = arith.constant 0 : i32
    %4 = arith.cmpi ne, %3, %c0_i32_1 : i32
    scf.if %4 {
      "tpu.region"() ({
        %30 = tpu.sem_alloc : memref<!tpu.dma_semaphore, #tpu.memory_space<semaphore_mem>>
        tpu.enqueue_dma source(%arg3 : memref<256x128xbf16, #tpu.memory_space<any>>) target(%arg10 : memref<256x128xbf16, #tpu.memory_space<vmem>>) target_semaphore(%30 : memref<!tpu.dma_semaphore, #tpu.memory_space<semaphore_mem>>)
        tpu.wait_dma2 semaphore(%30 : memref<!tpu.dma_semaphore, #tpu.memory_space<semaphore_mem>>) src(%arg3 : memref<256x128xbf16, #tpu.memory_space<any>>) dst(%arg10 : memref<256x128xbf16, #tpu.memory_space<vmem>>)
        tpu.yield
      }) : () -> ()
    } else {
    }
    %5 = arith.index_cast %arg1 : i32 to index
    %6 = memref.load %arg2[%5] : memref<1xi32, #tpu.memory_space<smem>>
    %c256_i32 = arith.constant 256 : i32
    %7 = arith.muli %6, %c256_i32 : i32
    %8 = tpu.assume_multiple %7, 256 : i32
    %c0 = arith.constant 0 : index
    %c0_2 = arith.constant 0 : index
    %9 = vector.load %arg4[%c0, %c0_2] : memref<256x256xbf16, #tpu.memory_space<vmem>>, vector<256x256xbf16>
    %10 = arith.extf %9 : vector<256x256xbf16> to vector<256x256xf32>
    %11 = arith.truncf %10 : vector<256x256xf32> to vector<256x256xbf16>
    %12 = arith.index_cast %8 : i32 to index
    %c0_3 = arith.constant 0 : index
    %13 = vector.load %arg10[%12, %c0_3] : memref<256x128xbf16, #tpu.memory_space<vmem>>, vector<256x128xbf16>
    %cst = arith.constant dense<0.000000e+00> : vector<256x128xf32>
    %14 = tpu.matmul %11, %13, %cst {dimension_numbers = #tpu.dot_dimension_numbers<[1], [0], [0], [1], [0, 0, 1, 1], [], []>} : vector<256x256xbf16>, vector<256x128xbf16>, vector<256x128xf32> -> vector<256x128xf32>
    %c0_4 = arith.constant 0 : index
    %c0_5 = arith.constant 0 : index
    %c0_6 = arith.constant 0 : index
    %15 = vector.load %arg5[%c0_4, %c0_5, %c0_6] : memref<1x256x128xbf16, #tpu.memory_space<vmem>>, vector<1x128x128xbf16>
    %16 = vector.shape_cast %15 : vector<1x128x128xbf16> to vector<128x128xbf16>
    %c0_7 = arith.constant 0 : index
    %c0_8 = arith.constant 0 : index
    %c0_9 = arith.constant 0 : index
    %17 = vector.load %arg6[%c0_7, %c0_8, %c0_9] : memref<1x6x128xf32, #tpu.memory_space<vmem>>, vector<1x1x128xf32>
    %18 = vector.shape_cast %17 : vector<1x1x128xf32> to vector<1x128xf32>
    %c256_i32_10 = arith.constant 256 : i32
    %19 = arith.muli %arg1, %c256_i32_10 : i32
    %20 = tpu.assume_multiple %19, 256 : i32
    %21 = arith.truncf %14 : vector<256x128xf32> to vector<256x128xbf16>
    %cst_11 = arith.constant dense<0.000000e+00> : vector<256x128xf32>
    %22 = tpu.matmul %21, %16, %cst_11 {dimension_numbers = #tpu.dot_dimension_numbers<[1], [0], [0], [1], [0, 0, 1, 1], [], []>} : vector<256x128xbf16>, vector<128x128xbf16>, vector<256x128xf32> -> vector<256x128xf32>
    %23 = vector.broadcast %18 : vector<1x128xf32> to vector<256x128xf32>
    %24 = arith.addf %22, %23 : vector<256x128xf32>
    %25 = arith.index_cast %20 : i32 to index
    %c0_12 = arith.constant 0 : index
    %26 = vector.load %arg11[%25, %c0_12] : memref<256x128xf32, #tpu.memory_space<vmem>>, vector<256x128xf32>
    tpu.vector_store %arg11[%25, %c0_12], %24 {strides = array<i32>} : memref<256x128xf32, #tpu.memory_space<vmem>>, vector<256x128xf32>,
    %c0_i32_13 = arith.constant 0 : i32
    %27 = arith.cmpi eq, %arg1, %c0_i32_13 : i32
    %28 = arith.extui %27 : i1 to i32
    %c0_i32_14 = arith.constant 0 : i32
    %29 = arith.cmpi ne, %28, %c0_i32_14 : i32
    scf.if %29 {
      %30 = tpu.iota {dimensions = array<i32: 0>} : vector<256x1xi32>
      %c200_i32 = arith.constant 200 : i32
      %31 = vector.broadcast %c200_i32 : i32 to vector<256x1xi32>
      %32 = arith.cmpi slt, %30, %31 : vector<256x1xi32>
      %33 = arith.extui %32 : vector<256x1xi1> to vector<256x1xi32>
      %34 = arith.sitofp %33 : vector<256x1xi32> to vector<256x1xf32>
      %c0_15 = arith.constant 0 : index
      %c0_16 = arith.constant 0 : index
      %35 = vector.load %arg11[%c0_15, %c0_16] : memref<256x128xf32, #tpu.memory_space<vmem>>, vector<256x128xf32>
      %c0_17 = arith.constant 0 : index
      %c1 = arith.constant 1 : index
      %c0_18 = arith.constant 0 : index
      %36 = vector.load %arg6[%c0_17, %c1, %c0_18] : memref<1x6x128xf32, #tpu.memory_space<vmem>>, vector<1x1x128xf32>
      %37 = vector.shape_cast %36 : vector<1x1x128xf32> to vector<1x128xf32>
      %c0_19 = arith.constant 0 : index
      %c2 = arith.constant 2 : index
      %c0_20 = arith.constant 0 : index
      %38 = vector.load %arg6[%c0_19, %c2, %c0_20] : memref<1x6x128xf32, #tpu.memory_space<vmem>>, vector<1x1x128xf32>
      %39 = vector.shape_cast %38 : vector<1x1x128xf32> to vector<1x128xf32>
      %40 = vector.broadcast %34 : vector<256x1xf32> to vector<256x128xf32>
      %41 = arith.mulf %35, %40 : vector<256x128xf32>
      %cst_21 = arith.constant dense<0.000000e+00> : vector<128xf32>
      %42 = vector.multi_reduction <add>, %41, %cst_21 [0] : vector<256x128xf32> to vector<128xf32>
      %43 = vector.shape_cast %42 : vector<128xf32> to vector<1x128xf32>
      %cst_22 = arith.constant 5.000000e-03 : f32
      %44 = vector.broadcast %cst_22 : f32 to vector<1x128xf32>
      %45 = arith.mulf %43, %44 : vector<1x128xf32>
      %46 = vector.broadcast %45 : vector<1x128xf32> to vector<256x128xf32>
      %47 = arith.subf %35, %46 : vector<256x128xf32>
      %48 = vector.broadcast %34 : vector<256x1xf32> to vector<256x128xf32>
      %49 = arith.mulf %47, %48 : vector<256x128xf32>
      %50 = arith.mulf %49, %49 : vector<256x128xf32>
      %cst_23 = arith.constant dense<0.000000e+00> : vector<128xf32>
      %51 = vector.multi_reduction <add>, %50, %cst_23 [0] : vector<256x128xf32> to vector<128xf32>
      %52 = vector.shape_cast %51 : vector<128xf32> to vector<1x128xf32>
      %cst_24 = arith.constant 5.000000e-03 : f32
      %53 = vector.broadcast %cst_24 : f32 to vector<1x128xf32>
      %54 = arith.mulf %52, %53 : vector<1x128xf32>
      %55 = vector.broadcast %45 : vector<1x128xf32> to vector<256x128xf32>
      %56 = arith.subf %35, %55 : vector<256x128xf32>
      %cst_25 = arith.constant 9.99999974E-6 : f32
      %57 = vector.broadcast %cst_25 : f32 to vector<1x128xf32>
      %58 = arith.addf %54, %57 : vector<1x128xf32>
      %59 = math.rsqrt %58 : vector<1x128xf32>
      %60 = vector.broadcast %59 : vector<1x128xf32> to vector<256x128xf32>
      %61 = arith.mulf %56, %60 : vector<256x128xf32>
      %62 = vector.broadcast %37 : vector<1x128xf32> to vector<256x128xf32>
      %63 = arith.mulf %61, %62 : vector<256x128xf32>
      %64 = vector.broadcast %39 : vector<1x128xf32> to vector<256x128xf32>
      %65 = arith.addf %63, %64 : vector<256x128xf32>
      %cst_26 = arith.constant 0.000000e+00 : f32
      %66 = vector.broadcast %cst_26 : f32 to vector<256x128xf32>
      %67 = arith.maximumf %65, %66 : vector<256x128xf32>
      %c0_27 = arith.constant 0 : index
      %c128 = arith.constant 128 : index
      %c0_28 = arith.constant 0 : index
      %68 = vector.load %arg5[%c0_27, %c128, %c0_28] : memref<1x256x128xbf16, #tpu.memory_space<vmem>>, vector<1x128x128xbf16>
      %69 = vector.shape_cast %68 : vector<1x128x128xbf16> to vector<128x128xbf16>
      %c0_29 = arith.constant 0 : index
      %c3 = arith.constant 3 : index
      %c0_30 = arith.constant 0 : index
      %70 = vector.load %arg6[%c0_29, %c3, %c0_30] : memref<1x6x128xf32, #tpu.memory_space<vmem>>, vector<1x1x128xf32>
      %71 = vector.shape_cast %70 : vector<1x1x128xf32> to vector<1x128xf32>
      %72 = arith.truncf %67 : vector<256x128xf32> to vector<256x128xbf16>
      %cst_31 = arith.constant dense<0.000000e+00> : vector<256x128xf32>
      %73 = tpu.matmul %72, %69, %cst_31 {dimension_numbers = #tpu.dot_dimension_numbers<[1], [0], [0], [1], [0, 0, 1, 1], [], []>} : vector<256x128xbf16>, vector<128x128xbf16>, vector<256x128xf32> -> vector<256x128xf32>
      %74 = vector.broadcast %71 : vector<1x128xf32> to vector<256x128xf32>
      %75 = arith.addf %73, %74 : vector<256x128xf32>
      %c0_32 = arith.constant 0 : index
      %c4 = arith.constant 4 : index
      %c0_33 = arith.constant 0 : index
      %76 = vector.load %arg6[%c0_32, %c4, %c0_33] : memref<1x6x128xf32, #tpu.memory_space<vmem>>, vector<1x1x128xf32>
      %77 = vector.shape_cast %76 : vector<1x1x128xf32> to vector<1x128xf32>
      %c0_34 = arith.constant 0 : index
      %c5 = arith.constant 5 : index
      %c0_35 = arith.constant 0 : index
      %78 = vector.load %arg6[%c0_34, %c5, %c0_35] : memref<1x6x128xf32, #tpu.memory_space<vmem>>, vector<1x1x128xf32>
      %79 = vector.shape_cast %78 : vector<1x1x128xf32> to vector<1x128xf32>
      %80 = vector.broadcast %34 : vector<256x1xf32> to vector<256x128xf32>
      %81 = arith.mulf %75, %80 : vector<256x128xf32>
      %cst_36 = arith.constant dense<0.000000e+00> : vector<128xf32>
      %82 = vector.multi_reduction <add>, %81, %cst_36 [0] : vector<256x128xf32> to vector<128xf32>
      %83 = vector.shape_cast %82 : vector<128xf32> to vector<1x128xf32>
      %cst_37 = arith.constant 5.000000e-03 : f32
      %84 = vector.broadcast %cst_37 : f32 to vector<1x128xf32>
      %85 = arith.mulf %83, %84 : vector<1x128xf32>
      %86 = vector.broadcast %85 : vector<1x128xf32> to vector<256x128xf32>
      %87 = arith.subf %75, %86 : vector<256x128xf32>
      %88 = vector.broadcast %34 : vector<256x1xf32> to vector<256x128xf32>
      %89 = arith.mulf %87, %88 : vector<256x128xf32>
      %90 = arith.mulf %89, %89 : vector<256x128xf32>
      %cst_38 = arith.constant dense<0.000000e+00> : vector<128xf32>
      %91 = vector.multi_reduction <add>, %90, %cst_38 [0] : vector<256x128xf32> to vector<128xf32>
      %92 = vector.shape_cast %91 : vector<128xf32> to vector<1x128xf32>
      %cst_39 = arith.constant 5.000000e-03 : f32
      %93 = vector.broadcast %cst_39 : f32 to vector<1x128xf32>
      %94 = arith.mulf %92, %93 : vector<1x128xf32>
      %95 = vector.broadcast %85 : vector<1x128xf32> to vector<256x128xf32>
      %96 = arith.subf %75, %95 : vector<256x128xf32>
      %cst_40 = arith.constant 9.99999974E-6 : f32
      %97 = vector.broadcast %cst_40 : f32 to vector<1x128xf32>
      %98 = arith.addf %94, %97 : vector<1x128xf32>
      %99 = math.rsqrt %98 : vector<1x128xf32>
      %100 = vector.broadcast %99 : vector<1x128xf32> to vector<256x128xf32>
      %101 = arith.mulf %96, %100 : vector<256x128xf32>
      %102 = vector.broadcast %77 : vector<1x128xf32> to vector<256x128xf32>
      %103 = arith.mulf %101, %102 : vector<256x128xf32>
      %104 = vector.broadcast %79 : vector<1x128xf32> to vector<256x128xf32>
      %105 = arith.addf %103, %104 : vector<256x128xf32>
      %cst_41 = arith.constant 0.000000e+00 : f32
      %106 = vector.broadcast %cst_41 : f32 to vector<256x128xf32>
      %107 = arith.maximumf %105, %106 : vector<256x128xf32>
      %108 = arith.truncf %107 : vector<256x128xf32> to vector<256x128xbf16>
      %c0_42 = arith.constant 0 : index
      %c0_43 = arith.constant 0 : index
      %109 = vector.load %arg10[%c0_42, %c0_43] : memref<256x128xbf16, #tpu.memory_space<vmem>>, vector<256x128xbf16>
      tpu.vector_store %arg10[%c0_42, %c0_43], %108 {strides = array<i32>} : memref<256x128xbf16, #tpu.memory_space<vmem>>, vector<256x128xbf16>,
      %c1_i32 = arith.constant 1 : i32
      %110 = arith.cmpi eq, %arg0, %c1_i32 : i32
      %111 = arith.extui %110 : i1 to i32
      %c0_i32_44 = arith.constant 0 : i32
      %112 = arith.cmpi ne, %111, %c0_i32_44 : i32
      scf.if %112 {
        %113 = vector.broadcast %34 : vector<256x1xf32> to vector<256x128xf32>
        %114 = arith.mulf %107, %113 : vector<256x128xf32>
        %c0_45 = arith.constant 0 : index
        %c0_46 = arith.constant 0 : index
        %115 = vector.load %arg9[%c0_45, %c0_46] : memref<256x128xf32, #tpu.memory_space<vmem>>, vector<256x128xf32>
        tpu.vector_store %arg9[%c0_45, %c0_46], %114 {strides = array<i32>} : memref<256x128xf32, #tpu.memory_space<vmem>>, vector<256x128xf32>,
        %c0_47 = arith.constant 0 : index
        %c0_48 = arith.constant 0 : index
        %116 = vector.load %arg7[%c0_47, %c0_48] : memref<16x256xbf16, #tpu.memory_space<vmem>>, vector<16x256xbf16>
        %117 = arith.truncf %107 : vector<256x128xf32> to vector<256x128xbf16>
        %cst_49 = arith.constant dense<0.000000e+00> : vector<16x128xf32>
        %118 = tpu.matmul %116, %117, %cst_49 {dimension_numbers = #tpu.dot_dimension_numbers<[1], [0], [0], [1], [0, 0, 1, 1], [], []>} : vector<16x256xbf16>, vector<256x128xbf16>, vector<16x128xf32> -> vector<16x128xf32>
        %c0_50 = arith.constant 0 : index
        %c0_51 = arith.constant 0 : index
        %119 = vector.load %arg8[%c0_50, %c0_51] : memref<16x128xf32, #tpu.memory_space<vmem>>, vector<16x128xf32>
        tpu.vector_store %arg8[%c0_50, %c0_51], %118 {strides = array<i32>} : memref<16x128xf32, #tpu.memory_space<vmem>>, vector<16x128xf32>,
      } else {
      }
    } else {
    }
    return
  }
  func.func @transform_1(%arg0: i32, %arg1: i32, %arg2: memref<1xi32, #tpu.memory_space<smem>>) -> (i32, i32) {
    %0 = arith.index_cast %arg1 : i32 to index
    %1 = memref.load %arg2[%0] : memref<1xi32, #tpu.memory_space<smem>>
    %c0_i32 = arith.constant 0 : i32
    return %arg1, %1 : i32, i32
  }
  func.func @transform_2(%arg0: i32, %arg1: i32, %arg2: memref<1xi32, #tpu.memory_space<smem>>) -> (i32, i32, i32) {
    %c0_i32 = arith.constant 0 : i32
    %c0_i32_0 = arith.constant 0 : i32
    %c0_i32_1 = arith.constant 0 : i32
    return %arg0, %c0_i32, %c0_i32_0 : i32, i32, i32
  }
  func.func @transform_3(%arg0: i32, %arg1: i32, %arg2: memref<1xi32, #tpu.memory_space<smem>>) -> (i32, i32, i32) {
    %c0_i32 = arith.constant 0 : i32
    %c0_i32_0 = arith.constant 0 : i32
    %c0_i32_1 = arith.constant 0 : i32
    return %arg0, %c0_i32, %c0_i32_0 : i32, i32, i32
  }
  func.func @transform_4(%arg0: i32, %arg1: i32, %arg2: memref<1xi32, #tpu.memory_space<smem>>) -> (i32, i32) {
    %c0_i32 = arith.constant 0 : i32
    %c0_i32_0 = arith.constant 0 : i32
    %c0_i32_1 = arith.constant 0 : i32
    return %c0_i32, %c0_i32_0 : i32, i32
  }
  func.func @transform_5(%arg0: i32, %arg1: i32, %arg2: memref<1xi32, #tpu.memory_space<smem>>) -> (i32, i32) {
    %c0_i32 = arith.constant 0 : i32
    %c0_i32_0 = arith.constant 0 : i32
    %c0_i32_1 = arith.constant 0 : i32
    return %c0_i32, %c0_i32_0 : i32, i32
  }
  func.func @transform_6(%arg0: i32, %arg1: i32, %arg2: memref<1xi32, #tpu.memory_space<smem>>) -> (i32, i32) {
    %c0_i32 = arith.constant 0 : i32
    %c0_i32_0 = arith.constant 0 : i32
    %c0_i32_1 = arith.constant 0 : i32
    return %c0_i32, %c0_i32_0 : i32, i32
  }
}

</mosaic_0001>

<llo_original>
// kernel: tpu_custom_call.1
$region0: #{tpu_custom_call.1}
  #allocation0 [shape = 'u32[]', space=smem, size = 0x4, offset = 0x4, fixed_abs, tag = 'smem constant byte address 0x4 - core index']
  #allocation1 [shape = 'u32[144,128]{1,0:T(1,128)}', space=vmem, size = 0x12000, scoped, tag = 'internal scratch']
  #allocation2 [shape = 'bf16[256,128]{1,0:T(8,128)(2,1)}', space=vmem, size = 0x10000, scoped, tag = 'scratch operand']
  #allocation3 [shape = 'f32[256,128]{1,0:T(8,128)}', space=vmem, size = 0x20000, scoped, tag = 'scratch operand']
  #allocation4 [shape = 's32[1]{0}', space=sflag, size = 0x4, scoped, tag = 'scoped memory for tpu_custom_call.1']
  #allocation5 [shape = 's32[1]{0:T(128)S(6)}', space=smem, size = 0x200, scoped, tag = 'prefetched SMEM operand 0']
  #allocation15 [shape = 's32[]', space=sflag, size = 0x4, offset = 0, fixed_abs, tag = 'sflag constant byte address 0x0 - dummy sync flag']
  #allocation16 [shape = 's32[]', space=sflag, size = 0x4, offset = 0, fixed_abs, tag = 'sflag constant byte address 0x0 - dummy sync flag']
  #allocation17 [shape = 'u32[]', space=smem, size = 0x4, offset = 0x44, fixed_abs, tag = 'smem constant byte address 0x44 - assertion arg 0']
  #allocation18 [shape = 'u32[]', space=smem, size = 0x4, offset = 0x48, fixed_abs, tag = 'smem constant byte address 0x48 - assertion arg 1']
  %s0 = inlined_call_operand.<no memory space> [shape: s32[1], index: 0, kind: input, shape index: {}]
  %s1 = inlined_call_operand.hbm [shape: bf16[256,128], index: 1, kind: input, shape index: {}]
  %s2 = inlined_call_operand.hbm [shape: bf16[256,256], index: 2, kind: input, shape index: {}]
  %s3 = inlined_call_operand.hbm [shape: bf16[2,256,128], index: 3, kind: input, shape index: {}]
  %s4 = inlined_call_operand.vmem [shape: f32[2,6,128], index: 4, kind: input, shape index: {}]
  %s5 = inlined_call_operand.vmem [shape: bf16[16,256], index: 5, kind: input, shape index: {}]
  %s6 = inlined_call_operand.hbm [shape: f32[16,128], index: 6, kind: output, shape index: {0}]
  %s7 = inlined_call_operand.hbm [shape: f32[256,128], index: 7, kind: output, shape index: {1}]
  %8 = xla_tuple %s6, %s7
  %s9 = sld [smem:[#allocation0]]
  $region82: #{tpu_custom_call.1} parent=0
    _
  %s11 = ssub.s32 1, %s9
  %s12 = scalar_select 0, %s11, %s9
  %13 = sst [smem:[#allocation5]] %s0
  $region1: #{tpu_custom_call.1} parent=0
    #allocation6 [shape = 'u8[131072]{0}', space=vmem, size = 0x20000, scoped, tag = 'input window, operand 2, single buffered']
    #allocation7 [shape = 's32[2]{0}', space=sflag, size = 0x8, scoped, tag = 'scoped memory for tpu_custom_call.1']
    #allocation8 [shape = 's32[2]{0}', space=sflag, size = 0x8, scoped, tag = 'scoped memory for tpu_custom_call.1']
    #allocation9 [shape = 'u8[131072]{0}', space=vmem, size = 0x20000, scoped, tag = 'input window, operand 3']
    #allocation10 [shape = 's32[2]{0}', space=sflag, size = 0x8, scoped, tag = 'scoped memory for tpu_custom_call.1']
    #allocation11 [shape = 'u8[8192]{0}', space=vmem, size = 0x2000, scoped, tag = 'output window, operand 0, single buffered']
    #allocation12 [shape = 'u8[131072]{0}', space=vmem, size = 0x20000, scoped, tag = 'output window, operand 1, single buffered']
    #allocation13 [shape = 's32[1]{0}', space=sflag, size = 0x4, scoped, tag = 'scoped memory for tpu_custom_call.1']
    %14 = vsyncpa [#allocation7], 0
    %15 = vsyncpa [#allocation10], 0
    %s16 = scalar_lea.sflag [#allocation10], 1
    %17 = vsyncpa %s16, 0
    %18 = vsyncpa [#allocation8], 0
    %19 = vsyncpa [#allocation13], 0
    loop: start=0, step=1, limit=4
    $region2: #{tpu_custom_call.1} parent=1 // loop_pre_header
      _
    $region3: #{tpu_custom_call.1} parent=1 // loop_header
      %s21 = sphi 0, %s25
      %p22 = scmp.ge.s32.totalorder %s21, 4
      %s28 = sphi 0, %s40
      %s29 = sphi 0, %s36
      %s30 = sphi 0, %s28
      %s31 = sphi 0, %s29
      %s32 = sphi 0, %s30
      %s33 = sphi 0, %s31
      %s47 = sphi 0, %s49
      %s50 = sphi 0, %s47
      %s51 = sphi 0, %s50
      %s67 = sphi 0, %s51
      %s73 = sphi 0, %s75
      %s76 = sphi 0, %s73
      %s77 = sphi 0, %s76
      %s93 = sphi 0, %s77
      %s99 = sphi 0, %s101
      %s102 = sphi 0, %s99
      %s103 = sphi 0, %s102
      %s119 = sphi 0, %s103
      %s123 = sphi 0, %s123
      %s125 = sphi 0, %s123
      %s126 = sphi 0, %s125
      %s140 = sphi 0, %s126
      %s144 = sphi 0, %s144
      %s146 = sphi 0, %s144
      %s147 = sphi 0, %s146
      %s161 = sphi 0, %s147
      %s165 = sphi 0, %s165
      %s167 = sphi 0, %s165
      %s168 = sphi 0, %s167
      %s182 = sphi 0, %s168
    $region4: #{tpu_custom_call.1} parent=1 // loop_header_branch
      %24 = sbr.rel (%p22) target = $region8
    $region5: #{tpu_custom_call.1} parent=1 // loop_body
      %s26 = ssub.s32 %s21, 1
      %s27 = ssub.s32 %s21, 2
      %s34 = sadd.s32 1, %s29
      %p35 = scmp.ge.s32.totalorder %s34, 1
      %s36 = scalar_select %p35, 0, %s34
      %s37 = sadd.s32 1, %s28
      %s38 = scalar_select %p35, %s37, %s28
      %p39 = scmp.ge.s32.totalorder %s38, 2
      %s40 = scalar_select %p39, 0, %s38
      %s41 = sld [smem:[#allocation5 + %s29]]
      %s42 = sld [smem:[#allocation5 + %s36]]
      %s43 = ssub.s32 %s29, %s36
      %s44 = ssub.s32 %s41, %s42
      %s45 = sor.u32 %s43, %s44
      %p46 = scmp.eq.s32.totalorder %s45, 0
      %s48 = sadd.s32 %s47, 1
      %s49 = scalar_select %p46, %s47, %s48
      %p52 = pneg %p46
      %p53 = scmp.eq.s32.totalorder %s21, 1
      %p54 = por %p52, %p53
      %p55 = scmp.ne.s32.totalorder %s47, %s50
      %p56 = scmp.eq.s32.totalorder %s21, 0
      %p57 = por %p55, %p56
      %p58 = scmp.ne.s32.totalorder %s47, %s50
      %p59 = scmp.eq.s32.totalorder %s26, 1
      %p60 = por %p58, %p59
      %p61 = scmp.ne.s32.totalorder %s50, %s51
      %p62 = scmp.eq.s32.totalorder %s26, 0
      %p63 = por %p61, %p62
      %p64 = scmp.ne.s32.totalorder %s50, %s51
      %p65 = scmp.eq.s32.totalorder %s27, 1
      %p66 = por %p64, %p65
      %p68 = scmp.ne.s32.totalorder %s51, %s67
      %p69 = scmp.eq.s32.totalorder %s27, 0
      %p70 = por %p68, %p69
      %s71 = ssub.s32 %s28, %s40
      %p72 = scmp.eq.s32.totalorder %s71, 0
      %s74 = sadd.s32 %s73, 1
      %s75 = scalar_select %p72, %s73, %s74
      %p78 = pneg %p72
      %p79 = scmp.eq.s32.totalorder %s21, 1
      %p80 = por %p78, %p79
      %p81 = scmp.ne.s32.totalorder %s73, %s76
      %p82 = scmp.eq.s32.totalorder %s21, 0
      %p83 = por %p81, %p82
      %p84 = scmp.ne.s32.totalorder %s73, %s76
      %p85 = scmp.eq.s32.totalorder %s26, 1
      %p86 = por %p84, %p85
      %p87 = scmp.ne.s32.totalorder %s76, %s77
      %p88 = scmp.eq.s32.totalorder %s26, 0
      %p89 = por %p87, %p88
      %p90 = scmp.ne.s32.totalorder %s76, %s77
      %p91 = scmp.eq.s32.totalorder %s27, 1
      %p92 = por %p90, %p91
      %p94 = scmp.ne.s32.totalorder %s77, %s93
      %p95 = scmp.eq.s32.totalorder %s27, 0
      %p96 = por %p94, %p95
      %s97 = ssub.s32 %s28, %s40
      %p98 = scmp.eq.s32.totalorder %s97, 0
      %s100 = sadd.s32 %s99, 1
      %s101 = scalar_select %p98, %s99, %s100
      %p104 = pneg %p98
      %p105 = scmp.eq.s32.totalorder %s21, 1
      %p106 = por %p104, %p105
      %p107 = scmp.ne.s32.totalorder %s99, %s102
      %p108 = scmp.eq.s32.totalorder %s21, 0
      %p109 = por %p107, %p108
      %p110 = scmp.ne.s32.totalorder %s99, %s102
      %p111 = scmp.eq.s32.totalorder %s26, 1
      %p112 = por %p110, %p111
      %p113 = scmp.ne.s32.totalorder %s102, %s103
      %p114 = scmp.eq.s32.totalorder %s26, 0
      %p115 = por %p113, %p114
      %p116 = scmp.ne.s32.totalorder %s102, %s103
      %p117 = scmp.eq.s32.totalorder %s27, 1
      %p118 = por %p116, %p117
      %p120 = scmp.ne.s32.totalorder %s103, %s119
      %p121 = scmp.eq.s32.totalorder %s27, 0
      %p122 = por %p120, %p121
      %s124 = sadd.s32 %s123, 1
      %p127 = scmp.eq.s32.totalorder %s21, 1
      %p128 = scmp.ne.s32.totalorder %s123, %s125
      %p129 = scmp.eq.s32.totalorder %s21, 0
      %p130 = por %p128, %p129
      %p131 = scmp.ne.s32.totalorder %s123, %s125
      %p132 = scmp.eq.s32.totalorder %s26, 1
      %p133 = por %p131, %p132
      %p134 = scmp.ne.s32.totalorder %s125, %s126
      %p135 = scmp.eq.s32.totalorder %s26, 0
      %p136 = por %p134, %p135
      %p137 = scmp.ne.s32.totalorder %s125, %s126
      %p138 = scmp.eq.s32.totalorder %s27, 1
      %p139 = por %p137, %p138
      %p141 = scmp.ne.s32.totalorder %s126, %s140
      %p142 = scmp.eq.s32.totalorder %s27, 0
      %p143 = por %p141, %p142
      %s145 = sadd.s32 %s144, 1
      %p148 = scmp.eq.s32.totalorder %s21, 1
      %p149 = scmp.ne.s32.totalorder %s144, %s146
      %p150 = scmp.eq.s32.totalorder %s21, 0
      %p151 = por %p149, %p150
      %p152 = scmp.ne.s32.totalorder %s144, %s146
      %p153 = scmp.eq.s32.totalorder %s26, 1
      %p154 = por %p152, %p153
      %p155 = scmp.ne.s32.totalorder %s146, %s147
      %p156 = scmp.eq.s32.totalorder %s26, 0
      %p157 = por %p155, %p156
      %p158 = scmp.ne.s32.totalorder %s146, %s147
      %p159 = scmp.eq.s32.totalorder %s27, 1
      %p160 = por %p158, %p159
      %p162 = scmp.ne.s32.totalorder %s147, %s161
      %p163 = scmp.eq.s32.totalorder %s27, 0
      %p164 = por %p162, %p163
      %s166 = sadd.s32 %s165, 1
      %p169 = scmp.eq.s32.totalorder %s21, 1
      %p170 = scmp.ne.s32.totalorder %s165, %s167
      %p171 = scmp.eq.s32.totalorder %s21, 0
      %p172 = por %p170, %p171
      %p173 = scmp.ne.s32.totalorder %s165, %s167
      %p174 = scmp.eq.s32.totalorder %s26, 1
      %p175 = por %p173, %p174
      %p176 = scmp.ne.s32.totalorder %s167, %s168
      %p177 = scmp.eq.s32.totalorder %s26, 0
      %p178 = por %p176, %p177
      %p179 = scmp.ne.s32.totalorder %s167, %s168
      %p180 = scmp.eq.s32.totalorder %s27, 1
      %p181 = por %p179, %p180
      %p183 = scmp.ne.s32.totalorder %s168, %s182
      %p184 = scmp.eq.s32.totalorder %s27, 0
      %p185 = por %p183, %p184
      %p186 = scmp.le.s32.totalorder 1, %s21
      %p187 = scmp.lt.s32.totalorder %s21, 3
      %p188 = pnand %p186, %p187
      %p189 = pneg %p188
      // Predicated region
      $region9: #{tpu_custom_call.1} parent=5 // pred_check
        _
      $region10: #{tpu_custom_call.1} parent=5 // pred_check_branch
        %191 = sbr.rel (%p188) target = $region12
      $region11: #{tpu_custom_call.1} parent=5 // pred_region
        %s192 = ssub.s32 %s21, 1
        // Predicated region
        $region13: #{tpu_custom_call.1} parent=11 // pred_check
          %p193 = pneg %p63
        $region14: #{tpu_custom_call.1} parent=11 // pred_check_branch
          %195 = sbr.rel (%p193) target = $region16
        $region15: #{tpu_custom_call.1} parent=11 // pred_region
          %s196 = sld [smem:[#allocation5 + %s31]]
          %s197 = smul.u32 32, %s31
          %s198 = smul.u32 2, %s196
          %s200 = ssub.s32 4096, 4096
          %201 = vsyncadd [#allocation7], %s200
          %s202 = smul.addr %s197, 2
          %s203 = sadd.s32 %s198, %s202
          %s204 = smul.addr %s203, 64
          %s205 = scalar_lea.hbm %s2, %s204
          %s206 = sshll.u32 [#allocation6], 4
          %s207 = int_to_ptr.vmem [resolvable:$true] %s206
          %212 = dma.hbm_to_vmem [thread:$0]  %s205, 4096, %s207, [#allocation7], 128, 128, 8
        $region16: #{tpu_custom_call.1} parent=11 // pred_fallthru
          _
        // Predicated region
        $region17: #{tpu_custom_call.1} parent=11 // pred_check
          %p213 = pneg %p136
        $region18: #{tpu_custom_call.1} parent=11 // pred_check_branch
          %215 = sbr.rel (%p213) target = $region20
        $region19: #{tpu_custom_call.1} parent=11 // pred_region
          _
        $region20: #{tpu_custom_call.1} parent=11 // pred_fallthru
          _
      $region12: #{tpu_custom_call.1} parent=5 // pred_fallthru
        _
      %p216 = scmp.lt.s32.totalorder %s21, 2
      // Predicated region
      $region21: #{tpu_custom_call.1} parent=5 // pred_check
        %p217 = pneg %p216
      $region22: #{tpu_custom_call.1} parent=5 // pred_check_branch
        %219 = sbr.rel (%p217) target = $region24
      $region23: #{tpu_custom_call.1} parent=5 // pred_region
        // Predicated region
        $region25: #{tpu_custom_call.1} parent=23 // pred_check
          %p220 = pneg %p83
        $region26: #{tpu_custom_call.1} parent=23 // pred_check_branch
          %222 = sbr.rel (%p220) target = $region28
        $region27: #{tpu_custom_call.1} parent=23 // pred_region
          %s223 = sand.u32 %s73, 1
          %s224 = scalar_lea.sflag [#allocation10], %s223
          %s225 = sand.u32 %s73, 1
          %s226 = smul.addr %s225, 128
          %s227 = scalar_lea.vmem [#allocation9], %s226
          %s229 = ssub.s32 2048, 2048
          %230 = vsyncadd %s224, %s229
          %s231 = smul.addr %s28, 32
          %s232 = smul.addr %s231, 64
          %s233 = scalar_lea.hbm %s3, %s232
          %s234 = sshll.u32 %s227, 4
          %s235 = int_to_ptr.vmem [resolvable:$true] %s234
          %240 = dma.hbm_to_vmem [thread:$0]  %s233, 2048, %s235, %s224, 64, 64, 4
        $region28: #{tpu_custom_call.1} parent=23 // pred_fallthru
          _
        // Predicated region
        $region29: #{tpu_custom_call.1} parent=23 // pred_check
          %p241 = pneg %p109
        $region30: #{tpu_custom_call.1} parent=23 // pred_check_branch
          %243 = sbr.rel (%p241) target = $region32
        $region31: #{tpu_custom_call.1} parent=23 // pred_region
          %p244 = scmp.lt.s32.totalorder %s28, 1
          %s245 = scalar_select %p244, %s28, 1
          %s246 = smul.addr %s245, 8
          %s247 = scalar_lea.vmem %s4, %s246
        $region32: #{tpu_custom_call.1} parent=23 // pred_fallthru
          _
      $region24: #{tpu_custom_call.1} parent=5 // pred_fallthru
        _
      %p248 = scmp.le.s32.totalorder 1, %s21
      %p249 = scmp.lt.s32.totalorder %s21, 3
      %p250 = pnand %p248, %p249
      %p251 = pneg %p250
      // Predicated region
      $region33: #{tpu_custom_call.1} parent=5 // pred_check
        _
      $region34: #{tpu_custom_call.1} parent=5 // pred_check_branch
        %253 = sbr.rel (%p250) target = $region36
      $region35: #{tpu_custom_call.1} parent=5 // pred_region
        %s254 = ssub.s32 %s21, 1
        // Predicated region
        $region37: #{tpu_custom_call.1} parent=35 // pred_check
          %p255 = pneg %p63
        $region38: #{tpu_custom_call.1} parent=35 // pred_check_branch
          %257 = sbr.rel (%p255) target = $region40
        $region39: #{tpu_custom_call.1} parent=35 // pred_region
          %258 = dma.done [#allocation7], 4096
        $region40: #{tpu_custom_call.1} parent=35 // pred_fallthru
          _
        %s259 = sand.u32 %s76, 1
        %s260 = scalar_lea.sflag [#allocation10], %s259
        %s261 = sand.u32 %s76, 1
        %s262 = smul.addr %s261, 128
        %s263 = scalar_lea.vmem [#allocation9], %s262
        // Predicated region
        $region41: #{tpu_custom_call.1} parent=35 // pred_check
          %p264 = pneg %p89
        $region42: #{tpu_custom_call.1} parent=35 // pred_check_branch
          %266 = sbr.rel (%p264) target = $region44
        $region43: #{tpu_custom_call.1} parent=35 // pred_region
          %267 = dma.done %s260, 2048
        $region44: #{tpu_custom_call.1} parent=35 // pred_fallthru
          _
        %p268 = pneg %p63
        %p269 = pneg %p60
        %s270 = sand.u32 %s76, 1
        %s271 = scalar_lea.sflag [#allocation10], %s270
        %s272 = sand.u32 %s76, 1
        %s273 = smul.addr %s272, 128
        %s274 = scalar_lea.vmem [#allocation9], %s273
        %p275 = pneg %p89
        %p276 = pneg %p86
        %p277 = scmp.lt.s32.totalorder %s30, 1
        %s278 = scalar_select %p277, %s30, 1
        %s279 = smul.addr %s278, 8
        %s280 = scalar_lea.vmem %s4, %s279
        %p281 = pneg %p115
        %p282 = pneg %p112
        %p283 = pneg %p136
        %p284 = pneg %p133
        %p285 = pneg %p157
        %p286 = pneg %p154
        %p287 = pneg %p178
        %p288 = pneg %p175
        %s289 = sld [smem:[#allocation5 + %s31]]
        %s290 = smul.u32 32, %s31
        %s291 = smul.u32 2, %s289
        %p292 = scmp.lt.s32.totalorder %s30, 1
        %s293 = scalar_select %p292, %s30, 1
        %s294 = smul.addr %s293, 8
        %s295 = scalar_lea.vmem %s4, %s294
        %p297 = scmp.eq.s32.totalorder %s30, 0
        %p298 = scmp.eq.s32.totalorder %s31, 0
        %p299 = pnand %p297, %p298
        %p300 = pneg %p299
        // Predicated region
        $region45: #{tpu_custom_call.1} parent=35 // pred_check
          _
        $region46: #{tpu_custom_call.1} parent=35 // pred_check_branch
          %302 = sbr.rel (%p299) target = $region48
        $region47: #{tpu_custom_call.1} parent=35 // pred_region
          $region49: #{tpu_custom_call.1} parent=47
            #allocation14 [shape = 's32[1]{0}', space=sflag, size = 0x4, scoped, tag = 'scoped memory for tpu_custom_call.1']
            // Predicated region
            $region50: #{tpu_custom_call.1} parent=49 // pred_check
              _
            $region51: #{tpu_custom_call.1} parent=49 // pred_check_branch
              %304 = sbr.rel target = $region53
            $region52: #{tpu_custom_call.1} parent=49 // pred_region
              %305 = sst [smem:[#allocation17]] [#allocation16]
              %306 = sst [smem:[#allocation18]] [#allocation15]
            $region53: #{tpu_custom_call.1} parent=49 // pred_fallthru
              _
            %308 = shalt.err (0)
            %s310 = sshll.u32 [#allocation2], 4
            %s311 = int_to_ptr.vmem [resolvable:$true] %s310
            %313 = dma.hbm_to_vmem [thread:$0]  %s1, 2048, %s311, [#allocation14]
            %s314 = smul.u32 4, 32
            %s315 = smul.u32 %s314, 1
            %s316 = sshll.u32 %s315, 4
            %317 = dma.done [#allocation14], %s316
        $region48: #{tpu_custom_call.1} parent=35 // pred_fallthru
          _
        %s318 = sld [smem:[#allocation5 + %s31]]
        %s319 = smul.u32 %s318, 256
        %v320 = vld [vmem:[#allocation6] sm:$0xff]
        %v321 = vld [vmem:[#allocation6 + $0x8] sm:$0xff]
        %v322 = vld [vmem:[#allocation6 + $0x10] sm:$0xff]
        %v323 = vld [vmem:[#allocation6 + $0x18] sm:$0xff]
        %v324 = vld [vmem:[#allocation6 + $0x20] sm:$0xff]
        %v325 = vld [vmem:[#allocation6 + $0x28] sm:$0xff]
        %v326 = vld [vmem:[#allocation6 + $0x30] sm:$0xff]
        %v327 = vld [vmem:[#allocation6 + $0x38] sm:$0xff]
        %v328 = vld [vmem:[#allocation6 + $0x40] sm:$0xff]
        %v329 = vld [vmem:[#allocation6 + $0x48] sm:$0xff]
        %v330 = vld [vmem:[#allocation6 + $0x50] sm:$0xff]
        %v331 = vld [vmem:[#allocation6 + $0x58] sm:$0xff]
        %v332 = vld [vmem:[#allocation6 + $0x60] sm:$0xff]
        %v333 = vld [vmem:[#allocation6 + $0x68] sm:$0xff]
        %v334 = vld [vmem:[#allocation6 + $0x70] sm:$0xff]
        %v335 = vld [vmem:[#allocation6 + $0x78] sm:$0xff]
        %v336 = vld [vmem:[#allocation6 + $0x80] sm:$0xff]
        %v337 = vld [vmem:[#allocation6 + $0x88] sm:$0xff]
        %v338 = vld [vmem:[#allocation6 + $0x90] sm:$0xff]
        %v339 = vld [vmem:[#allocation6 + $0x98] sm:$0xff]
        %v340 = vld [vmem:[#allocation6 + $0xa0] sm:$0xff]
        %v341 = vld [vmem:[#allocation6 + $0xa8] sm:$0xff]
        %v342 = vld [vmem:[#allocation6 + $0xb0] sm:$0xff]
        %v343 = vld [vmem:[#allocation6 + $0xb8] sm:$0xff]
        %v344 = vld [vmem:[#allocation6 + $0xc0] sm:$0xff]
        %v345 = vld [vmem:[#allocation6 + $0xc8] sm:$0xff]
        %v346 = vld [vmem:[#allocation6 + $0xd0] sm:$0xff]
        %v347 = vld [vmem:[#allocation6 + $0xd8] sm:$0xff]
        %v348 = vld [vmem:[#allocation6 + $0xe0] sm:$0xff]
        %v349 = vld [vmem:[#allocation6 + $0xe8] sm:$0xff]
        %v350 = vld [vmem:[#allocation6 + $0xf0] sm:$0xff]
        %v351 = vld [vmem:[#allocation6 + $0xf8] sm:$0xff]
        %s352 = sshra.s32 %s319, 3
        %s353 = sand.u32 %s319, 7
        %s354 = smul.addr %s352, 4
        %s355 = scalar_lea.vmem [#allocation2], %s354
        %v356 = vld [vmem:[%s355] sm:$0xf]
        %v357 = vld [vmem:[%s355 + $0x4] sm:$0xf]
        %v358 = vld [vmem:[%s355 + $0x8] sm:$0xf]
        %v359 = vld [vmem:[%s355 + $0xc] sm:$0xf]
        %v360 = vld [vmem:[%s355 + $0x10] sm:$0xf]
        %v361 = vld [vmem:[%s355 + $0x14] sm:$0xf]
        %v362 = vld [vmem:[%s355 + $0x18] sm:$0xf]
        %v363 = vld [vmem:[%s355 + $0x1c] sm:$0xf]
        %v364 = vld [vmem:[%s355 + $0x20] sm:$0xf]
        %v365 = vld [vmem:[%s355 + $0x24] sm:$0xf]
        %v366 = vld [vmem:[%s355 + $0x28] sm:$0xf]
        %v367 = vld [vmem:[%s355 + $0x2c] sm:$0xf]
        %v368 = vld [vmem:[%s355 + $0x30] sm:$0xf]
        %v369 = vld [vmem:[%s355 + $0x34] sm:$0xf]
        %v370 = vld [vmem:[%s355 + $0x38] sm:$0xf]
        %v371 = vld [vmem:[%s355 + $0x3c] sm:$0xf]
        %v372 = vld [vmem:[%s355 + $0x40] sm:$0xf]
        %v373 = vld [vmem:[%s355 + $0x44] sm:$0xf]
        %v374 = vld [vmem:[%s355 + $0x48] sm:$0xf]
        %v375 = vld [vmem:[%s355 + $0x4c] sm:$0xf]
        %v376 = vld [vmem:[%s355 + $0x50] sm:$0xf]
        %v377 = vld [vmem:[%s355 + $0x54] sm:$0xf]
        %v378 = vld [vmem:[%s355 + $0x58] sm:$0xf]
        %v379 = vld [vmem:[%s355 + $0x5c] sm:$0xf]
        %v380 = vld [vmem:[%s355 + $0x60] sm:$0xf]
        %v381 = vld [vmem:[%s355 + $0x64] sm:$0xf]
        %v382 = vld [vmem:[%s355 + $0x68] sm:$0xf]
        %v383 = vld [vmem:[%s355 + $0x6c] sm:$0xf]
        %v384 = vld [vmem:[%s355 + $0x70] sm:$0xf]
        %v385 = vld [vmem:[%s355 + $0x74] sm:$0xf]
        %v386 = vld [vmem:[%s355 + $0x78] sm:$0xf]
        %v387 = vld [vmem:[%s355 + $0x7c] sm:$0xf]
        %v420 = vunpack.c.l.b16 %v320
        %v421 = vunpack.c.h.b16 %v320
        %v422 = vunpack.c.l.b16 %v321
        %v423 = vunpack.c.h.b16 %v321
        %v424 = vunpack.c.l.b16 %v322
        %v425 = vunpack.c.h.b16 %v322
        %v426 = vunpack.c.l.b16 %v323
        %v427 = vunpack.c.h.b16 %v323
        %v428 = vunpack.c.l.b16 %v324
        %v429 = vunpack.c.h.b16 %v324
        %v430 = vunpack.c.l.b16 %v325
        %v431 = vunpack.c.h.b16 %v325
        %v432 = vunpack.c.l.b16 %v326
        %v433 = vunpack.c.h.b16 %v326
        %v434 = vunpack.c.l.b16 %v327
        %v435 = vunpack.c.h.b16 %v327
        %v436 = vunpack.c.l.b16 %v328
        %v437 = vunpack.c.h.b16 %v328
        %v438 = vunpack.c.l.b16 %v329
        %v439 = vunpack.c.h.b16 %v329
        %v440 = vunpack.c.l.b16 %v330
        %v441 = vunpack.c.h.b16 %v330
        %v442 = vunpack.c.l.b16 %v331
        %v443 = vunpack.c.h.b16 %v331
        %v444 = vunpack.c.l.b16 %v332
        %v445 = vunpack.c.h.b16 %v332
        %v446 = vunpack.c.l.b16 %v333
        %v447 = vunpack.c.h.b16 %v333
        %v448 = vunpack.c.l.b16 %v334
        %v449 = vunpack.c.h.b16 %v334
        %v450 = vunpack.c.l.b16 %v335
        %v451 = vunpack.c.h.b16 %v335
        %v452 = vunpack.c.l.b16 %v336
        %v453 = vunpack.c.h.b16 %v336
        %v454 = vunpack.c.l.b16 %v337
        %v455 = vunpack.c.h.b16 %v337
        %v456 = vunpack.c.l.b16 %v338
        %v457 = vunpack.c.h.b16 %v338
        %v458 = vunpack.c.l.b16 %v339
        %v459 = vunpack.c.h.b16 %v339
        %v460 = vunpack.c.l.b16 %v340
        %v461 = vunpack.c.h.b16 %v340
        %v462 = vunpack.c.l.b16 %v341
        %v463 = vunpack.c.h.b16 %v341
        %v464 = vunpack.c.l.b16 %v342
        %v465 = vunpack.c.h.b16 %v342
        %v466 = vunpack.c.l.b16 %v343
        %v467 = vunpack.c.h.b16 %v343
        %v468 = vunpack.c.l.b16 %v344
        %v469 = vunpack.c.h.b16 %v344
        %v470 = vunpack.c.l.b16 %v345
        %v471 = vunpack.c.h.b16 %v345
        %v472 = vunpack.c.l.b16 %v346
        %v473 = vunpack.c.h.b16 %v346
        %v474 = vunpack.c.l.b16 %v347
        %v475 = vunpack.c.h.b16 %v347
        %v476 = vunpack.c.l.b16 %v348
        %v477 = vunpack.c.h.b16 %v348
        %v478 = vunpack.c.l.b16 %v349
        %v479 = vunpack.c.h.b16 %v349
        %v480 = vunpack.c.l.b16 %v350
        %v481 = vunpack.c.h.b16 %v350
        %v482 = vunpack.c.l.b16 %v351
        %v483 = vunpack.c.h.b16 %v351
        %v484 = vpack.c.b16 %v422, %v420
        %v485 = vpack.c.b16 %v423, %v421
        %v486 = vpack.c.b16 %v426, %v424
        %v487 = vpack.c.b16 %v427, %v425
        %v488 = vpack.c.b16 %v430, %v428
        %v489 = vpack.c.b16 %v431, %v429
        %v490 = vpack.c.b16 %v434, %v432
        %v491 = vpack.c.b16 %v435, %v433
        %v492 = vpack.c.b16 %v438, %v436
        %v493 = vpack.c.b16 %v439, %v437
        %v494 = vpack.c.b16 %v442, %v440
        %v495 = vpack.c.b16 %v443, %v441
        %v496 = vpack.c.b16 %v446, %v444
        %v497 = vpack.c.b16 %v447, %v445
        %v498 = vpack.c.b16 %v450, %v448
        %v499 = vpack.c.b16 %v451, %v449
        %v500 = vpack.c.b16 %v454, %v452
        %v501 = vpack.c.b16 %v455, %v453
        %v502 = vpack.c.b16 %v458, %v456
        %v503 = vpack.c.b16 %v459, %v457
        %v504 = vpack.c.b16 %v462, %v460
        %v505 = vpack.c.b16 %v463, %v461
        %v506 = vpack.c.b16 %v466, %v464
        %v507 = vpack.c.b16 %v467, %v465
        %v508 = vpack.c.b16 %v470, %v468
        %v509 = vpack.c.b16 %v471, %v469
        %v510 = vpack.c.b16 %v474, %v472
        %v511 = vpack.c.b16 %v475, %v473
        %v512 = vpack.c.b16 %v478, %v476
        %v513 = vpack.c.b16 %v479, %v477
        %v514 = vpack.c.b16 %v482, %v480
        %v515 = vpack.c.b16 %v483, %v481
        %v580 = vunpack.c.l.b16 %v356
        %v581 = vunpack.c.l.b16 %v357
        %v582 = vunpack.c.l.b16 %v358
        %v583 = vunpack.c.l.b16 %v359
        %v584 = vunpack.c.l.b16 %v360
        %v585 = vunpack.c.l.b16 %v361
        %v586 = vunpack.c.l.b16 %v362
        %v587 = vunpack.c.l.b16 %v363
        %v588 = vunpack.c.l.b16 %v364
        %v589 = vunpack.c.l.b16 %v365
        %v590 = vunpack.c.l.b16 %v366
        %v591 = vunpack.c.l.b16 %v367
        %v592 = vunpack.c.l.b16 %v368
        %v593 = vunpack.c.l.b16 %v369
        %v594 = vunpack.c.l.b16 %v370
        %v595 = vunpack.c.l.b16 %v371
        %v596 = vunpack.c.l.b16 %v372
        %v597 = vunpack.c.l.b16 %v373
        %v598 = vunpack.c.l.b16 %v374
        %v599 = vunpack.c.l.b16 %v375
        %v600 = vunpack.c.l.b16 %v376
        %v601 = vunpack.c.l.b16 %v377
        %v602 = vunpack.c.l.b16 %v378
        %v603 = vunpack.c.l.b16 %v379
        %v604 = vunpack.c.l.b16 %v380
        %v605 = vunpack.c.l.b16 %v381
        %v606 = vunpack.c.l.b16 %v382
        %v607 = vunpack.c.l.b16 %v383
        %v608 = vunpack.c.l.b16 %v384
        %v609 = vunpack.c.l.b16 %v385
        %v610 = vunpack.c.l.b16 %v386
        %v611 = vunpack.c.l.b16 %v387
        %v612 = vpack.c.b16 %v581, %v580
        %v613 = vpack.c.b16 %v583, %v582
        %v614 = vpack.c.b16 %v585, %v584
        %v615 = vpack.c.b16 %v587, %v586
        %v616 = vpack.c.b16 %v589, %v588
        %v617 = vpack.c.b16 %v591, %v590
        %v618 = vpack.c.b16 %v593, %v592
        %v619 = vpack.c.b16 %v595, %v594
        %v620 = vpack.c.b16 %v597, %v596
        %v621 = vpack.c.b16 %v599, %v598
        %v622 = vpack.c.b16 %v601, %v600
        %v623 = vpack.c.b16 %v603, %v602
        %v624 = vpack.c.b16 %v605, %v604
        %v625 = vpack.c.b16 %v607, %v606
        %v626 = vpack.c.b16 %v609, %v608
        %v627 = vpack.c.b16 %v611, %v610
        %644 = vmatprep.subr.bf16.mxu0 0
        %645 = vmatpush1.bf16.msra.mxu0 %v619
        %646 = vmatprep.subr.bf16.mxu0 0
        %647 = vmatpush1.bf16.msra.mxu0 %v618
        %648 = vmatprep.subr.bf16.mxu0 0
        %649 = vmatpush1.bf16.msra.mxu0 %v617
        %650 = vmatprep.subr.bf16.mxu0 0
        %651 = vmatpush1.bf16.msra.mxu0 %v616
        %652 = vmatprep.subr.bf16.mxu0 0
        %653 = vmatpush1.bf16.msra.mxu0 %v615
        %654 = vmatprep.subr.bf16.mxu0 0
        %655 = vmatpush1.bf16.msra.mxu0 %v614
        %656 = vmatprep.subr.bf16.mxu0 0
        %657 = vmatpush1.bf16.msra.mxu0 %v613
        %658 = vmatprep.subr.bf16.mxu0 0
        %659 = vmatpush1.bf16.msra.mxu0 %v612
        %660 = vmatprep.subr.bf16.mxu0 0
        %661 = vmatpush2.bf16.msra.mxu0 %v627
        %662 = vmatprep.subr.bf16.mxu0 0
        %663 = vmatpush2.bf16.msra.mxu0 %v626
        %664 = vmatprep.subr.bf16.mxu0 0
        %665 = vmatpush2.bf16.msra.mxu0 %v625
        %666 = vmatprep.subr.bf16.mxu0 0
        %667 = vmatpush2.bf16.msra.mxu0 %v624
        %668 = vmatprep.subr.bf16.mxu0 0
        %669 = vmatpush2.bf16.msra.mxu0 %v623
        %670 = vmatprep.subr.bf16.mxu0 0
        %671 = vmatpush2.bf16.msra.mxu0 %v622
        %672 = vmatprep.subr.bf16.mxu0 0
        %673 = vmatpush2.bf16.msra.mxu0 %v621
        %674 = vmatprep.subr.bf16.mxu0 0
        %675 = vmatpush2.bf16.msra.mxu0 %v620
        %676 = vmatprep.mubr.bf16.mxu0 %v485
        %677 = vmatmul.mubr.bf16.gmra.mxu0 %v484
        %v678 = vpop.f32.mrf.mxu0
        %v679 = vadd.f32 0.0, %v678
        %v680 = vpop.f32.mrf.mxu0
        %v681 = vpop.f32.mrf.mxu0
        %v682 = vadd.f32 0.0, %v681
        %v683 = vpop.f32.mrf.mxu0
        %684 = vmatprep.mubr.bf16.mxu0 %v487
        %685 = vmatmul.mubr.bf16.gmra.mxu0 %v486
        %v686 = vpop.f32.mrf.mxu0
        %v687 = vadd.f32 0.0, %v686
        %v688 = vpop.f32.mrf.mxu0
        %v689 = vpop.f32.mrf.mxu0
        %v690 = vadd.f32 0.0, %v689
        %v691 = vpop.f32.mrf.mxu0
        %692 = vmatprep.mubr.bf16.mxu0 %v489
        %693 = vmatmul.mubr.bf16.gmra.mxu0 %v488
        %v694 = vpop.f32.mrf.mxu0
        %v695 = vadd.f32 0.0, %v694
        %v696 = vpop.f32.mrf.mxu0
        %v697 = vpop.f32.mrf.mxu0
        %v698 = vadd.f32 0.0, %v697
        %v699 = vpop.f32.mrf.mxu0
        %700 = vmatprep.mubr.bf16.mxu0 %v491
        %701 = vmatmul.mubr.bf16.gmra.mxu0 %v490
        %v702 = vpop.f32.mrf.mxu0
        %v703 = vadd.f32 0.0, %v702
        %v704 = vpop.f32.mrf.mxu0
        %v705 = vpop.f32.mrf.mxu0
        %v706 = vadd.f32 0.0, %v705
        %v707 = vpop.f32.mrf.mxu0
        %708 = vmatprep.mubr.bf16.mxu0 %v493
        %709 = vmatmul.mubr.bf16.gmra.mxu0 %v492
        %v710 = vpop.f32.mrf.mxu0
        %v711 = vadd.f32 0.0, %v710
        %v712 = vpop.f32.mrf.mxu0
        %v713 = vpop.f32.mrf.mxu0
        %v714 = vadd.f32 0.0, %v713
        %v715 = vpop.f32.mrf.mxu0
        %716 = vmatprep.mubr.bf16.mxu0 %v495
        %717 = vmatmul.mubr.bf16.gmra.mxu0 %v494
        %v718 = vpop.f32.mrf.mxu0
        %v719 = vadd.f32 0.0, %v718
        %v720 = vpop.f32.mrf.mxu0
        %v721 = vpop.f32.mrf.mxu0
        %v722 = vadd.f32 0.0, %v721
        %v723 = vpop.f32.mrf.mxu0
        %724 = vmatprep.mubr.bf16.mxu0 %v497
        %725 = vmatmul.mubr.bf16.gmra.mxu0 %v496
        %v726 = vpop.f32.mrf.mxu0
        %v727 = vadd.f32 0.0, %v726
        %v728 = vpop.f32.mrf.mxu0
        %v729 = vpop.f32.mrf.mxu0
        %v730 = vadd.f32 0.0, %v729
        %v731 = vpop.f32.mrf.mxu0
        %732 = vmatprep.mubr.bf16.mxu0 %v499
        %733 = vmatmul.mubr.bf16.gmra.mxu0 %v498
        %v734 = vpop.f32.mrf.mxu0
        %v735 = vadd.f32 0.0, %v734
        %v736 = vpop.f32.mrf.mxu0
        %v737 = vpop.f32.mrf.mxu0
        %v738 = vadd.f32 0.0, %v737
        %v739 = vpop.f32.mrf.mxu0
        %740 = vmatprep.mubr.bf16.mxu0 %v501
        %741 = vmatmul.mubr.bf16.gmra.mxu0 %v500
        %v742 = vpop.f32.mrf.mxu0
        %v743 = vadd.f32 0.0, %v742
        %v744 = vpop.f32.mrf.mxu0
        %v745 = vpop.f32.mrf.mxu0
        %v746 = vadd.f32 0.0, %v745
        %v747 = vpop.f32.mrf.mxu0
        %748 = vmatprep.mubr.bf16.mxu0 %v503
        %749 = vmatmul.mubr.bf16.gmra.mxu0 %v502
        %v750 = vpop.f32.mrf.mxu0
        %v751 = vadd.f32 0.0, %v750
        %v752 = vpop.f32.mrf.mxu0
        %v753 = vpop.f32.mrf.mxu0
        %v754 = vadd.f32 0.0, %v753
        %v755 = vpop.f32.mrf.mxu0
        %756 = vmatprep.mubr.bf16.mxu0 %v505
        %757 = vmatmul.mubr.bf16.gmra.mxu0 %v504
        %v758 = vpop.f32.mrf.mxu0
        %v759 = vadd.f32 0.0, %v758
        %v760 = vpop.f32.mrf.mxu0
        %v761 = vpop.f32.mrf.mxu0
        %v762 = vadd.f32 0.0, %v761
        %v763 = vpop.f32.mrf.mxu0
        %764 = vmatprep.mubr.bf16.mxu0 %v507
        %765 = vmatmul.mubr.bf16.gmra.mxu0 %v506
        %v766 = vpop.f32.mrf.mxu0
        %v767 = vadd.f32 0.0, %v766
        %v768 = vpop.f32.mrf.mxu0
        %v769 = vpop.f32.mrf.mxu0
        %v770 = vadd.f32 0.0, %v769
        %v771 = vpop.f32.mrf.mxu0
        %772 = vmatprep.mubr.bf16.mxu0 %v509
        %773 = vmatmul.mubr.bf16.gmra.mxu0 %v508
        %v774 = vpop.f32.mrf.mxu0
        %v775 = vadd.f32 0.0, %v774
        %v776 = vpop.f32.mrf.mxu0
        %v777 = vpop.f32.mrf.mxu0
        %v778 = vadd.f32 0.0, %v777
        %v779 = vpop.f32.mrf.mxu0
        %780 = vmatprep.mubr.bf16.mxu0 %v511
        %781 = vmatmul.mubr.bf16.gmra.mxu0 %v510
        %v782 = vpop.f32.mrf.mxu0
        %v783 = vadd.f32 0.0, %v782
        %v784 = vpop.f32.mrf.mxu0
        %v785 = vpop.f32.mrf.mxu0
        %v786 = vadd.f32 0.0, %v785
        %v787 = vpop.f32.mrf.mxu0
        %788 = vmatprep.mubr.bf16.mxu0 %v513
        %789 = vmatmul.mubr.bf16.gmra.mxu0 %v512
        %v790 = vpop.f32.mrf.mxu0
        %v791 = vadd.f32 0.0, %v790
        %v792 = vpop.f32.mrf.mxu0
        %v793 = vpop.f32.mrf.mxu0
        %v794 = vadd.f32 0.0, %v793
        %v795 = vpop.f32.mrf.mxu0
        %796 = vmatprep.mubr.bf16.mxu0 %v515
        %797 = vmatmul.mubr.bf16.gmra.mxu0 %v514
        %v798 = vpop.f32.mrf.mxu0
        %v799 = vadd.f32 0.0, %v798
        %v800 = vpop.f32.mrf.mxu0
        %v801 = vpop.f32.mrf.mxu0
        %v802 = vadd.f32 0.0, %v801
        %v803 = vpop.f32.mrf.mxu0
        %804 = vdwg.mxu0
        %v805 = vld [vmem:[%s263] sm:$0xf]
        %v806 = vld [vmem:[%s263 + $0x4] sm:$0xf]
        %v807 = vld [vmem:[%s263 + $0x8] sm:$0xf]
        %v808 = vld [vmem:[%s263 + $0xc] sm:$0xf]
        %v809 = vld [vmem:[%s263 + $0x10] sm:$0xf]
        %v810 = vld [vmem:[%s263 + $0x14] sm:$0xf]
        %v811 = vld [vmem:[%s263 + $0x18] sm:$0xf]
        %v812 = vld [vmem:[%s263 + $0x1c] sm:$0xf]
        %v813 = vld [vmem:[%s263 + $0x20] sm:$0xf]
        %v814 = vld [vmem:[%s263 + $0x24] sm:$0xf]
        %v815 = vld [vmem:[%s263 + $0x28] sm:$0xf]
        %v816 = vld [vmem:[%s263 + $0x2c] sm:$0xf]
        %v817 = vld [vmem:[%s263 + $0x30] sm:$0xf]
        %v818 = vld [vmem:[%s263 + $0x34] sm:$0xf]
        %v819 = vld [vmem:[%s263 + $0x38] sm:$0xf]
        %v820 = vld [vmem:[%s263 + $0x3c] sm:$0xf]
        %v821 = vld [vmem:[%s295] sm:$0x1]
        %s822 = smul.u32 %s31, 256
        %v823 = vpack.c.bf16 %v682, %v679
        %v824 = vpack.c.bf16 %v690, %v687
        %v825 = vpack.c.bf16 %v698, %v695
        %v826 = vpack.c.bf16 %v706, %v703
        %v827 = vpack.c.bf16 %v714, %v711
        %v828 = vpack.c.bf16 %v722, %v719
        %v829 = vpack.c.bf16 %v730, %v727
        %v830 = vpack.c.bf16 %v738, %v735
        %v831 = vpack.c.bf16 %v746, %v743
        %v832 = vpack.c.bf16 %v754, %v751
        %v833 = vpack.c.bf16 %v762, %v759
        %v834 = vpack.c.bf16 %v770, %v767
        %v835 = vpack.c.bf16 %v778, %v775
        %v836 = vpack.c.bf16 %v786, %v783
        %v837 = vpack.c.bf16 %v794, %v791
        %v838 = vpack.c.bf16 %v802, %v799
        %v839 = vlaneseq
        %v840 = vshrl.u32 %v839, 7
        %v841 = vsub.s32 0, %v840
        %v842 = vrot.slane %v821, %v841
        %v859 = vunpack.c.l.b16 %v805
        %v860 = vunpack.c.l.b16 %v806
        %v861 = vunpack.c.l.b16 %v807
        %v862 = vunpack.c.l.b16 %v808
        %v863 = vunpack.c.l.b16 %v809
        %v864 = vunpack.c.l.b16 %v810
        %v865 = vunpack.c.l.b16 %v811
        %v866 = vunpack.c.l.b16 %v812
        %v867 = vunpack.c.l.b16 %v813
        %v868 = vunpack.c.l.b16 %v814
        %v869 = vunpack.c.l.b16 %v815
        %v870 = vunpack.c.l.b16 %v816
        %v871 = vunpack.c.l.b16 %v817
        %v872 = vunpack.c.l.b16 %v818
        %v873 = vunpack.c.l.b16 %v819
        %v874 = vunpack.c.l.b16 %v820
        %v875 = vpack.c.b16 %v860, %v859
        %v876 = vpack.c.b16 %v862, %v861
        %v877 = vpack.c.b16 %v864, %v863
        %v878 = vpack.c.b16 %v866, %v865
        %v879 = vpack.c.b16 %v868, %v867
        %v880 = vpack.c.b16 %v870, %v869
        %v881 = vpack.c.b16 %v872, %v871
        %v882 = vpack.c.b16 %v874, %v873
        %891 = vmatprep.subr.bf16.mxu0 0
        %892 = vmatpush1.bf16.msra.mxu0 %v882
        %893 = vmatprep.subr.bf16.mxu0 0
        %894 = vmatpush1.bf16.msra.mxu0 %v881
        %895 = vmatprep.subr.bf16.mxu0 0
        %896 = vmatpush1.bf16.msra.mxu0 %v880
        %897 = vmatprep.subr.bf16.mxu0 0
        %898 = vmatpush1.bf16.msra.mxu0 %v879
        %899 = vmatprep.subr.bf16.mxu0 0
        %900 = vmatpush1.bf16.msra.mxu0 %v878
        %901 = vmatprep.subr.bf16.mxu0 0
        %902 = vmatpush1.bf16.msra.mxu0 %v877
        %903 = vmatprep.subr.bf16.mxu0 0
        %904 = vmatpush1.bf16.msra.mxu0 %v876
        %905 = vmatprep.subr.bf16.mxu0 0
        %906 = vmatpush1.bf16.msra.mxu0 %v875
        %907 = vmatprep.subr.bf16.mxu0 0
        %908 = vmatpush2.bf16.msra.mxu0 0
        %909 = vmatprep.subr.bf16.mxu0 0
        %910 = vmatpush2.bf16.msra.mxu0 0
        %911 = vmatprep.subr.bf16.mxu0 0
        %912 = vmatpush2.bf16.msra.mxu0 0
        %913 = vmatprep.subr.bf16.mxu0 0
        %914 = vmatpush2.bf16.msra.mxu0 0
        %915 = vmatprep.subr.bf16.mxu0 0
        %916 = vmatpush2.bf16.msra.mxu0 0
        %917 = vmatprep.subr.bf16.mxu0 0
        %918 = vmatpush2.bf16.msra.mxu0 0
        %919 = vmatprep.subr.bf16.mxu0 0
        %920 = vmatpush2.bf16.msra.mxu0 0
        %921 = vmatprep.subr.bf16.mxu0 0
        %922 = vmatpush2.bf16.msra.mxu0 0
        %923 = vmatprep.mubr.bf16.mxu0 0
        %924 = vmatmul.mubr.bf16.gmra.mxu0 %v823
        %v925 = vpop.f32.mrf.mxu0
        %v926 = vadd.f32 %v842, %v925
        %v927 = vpop.f32.mrf.mxu0
        %v928 = vpop.f32.mrf.mxu0
        %v929 = vadd.f32 %v842, %v928
        %v930 = vpop.f32.mrf.mxu0
        %931 = vmatprep.mubr.bf16.mxu0 0
        %932 = vmatmul.mubr.bf16.gmra.mxu0 %v824
        %v933 = vpop.f32.mrf.mxu0
        %v934 = vadd.f32 %v842, %v933
        %v935 = vpop.f32.mrf.mxu0
        %v936 = vpop.f32.mrf.mxu0
        %v937 = vadd.f32 %v842, %v936
        %v938 = vpop.f32.mrf.mxu0
        %939 = vmatprep.mubr.bf16.mxu0 0
        %940 = vmatmul.mubr.bf16.gmra.mxu0 %v825
        %v941 = vpop.f32.mrf.mxu0
        %v942 = vadd.f32 %v842, %v941
        %v943 = vpop.f32.mrf.mxu0
        %v944 = vpop.f32.mrf.mxu0
        %v945 = vadd.f32 %v842, %v944
        %v946 = vpop.f32.mrf.mxu0
        %947 = vmatprep.mubr.bf16.mxu0 0
        %948 = vmatmul.mubr.bf16.gmra.mxu0 %v826
        %v949 = vpop.f32.mrf.mxu0
        %v950 = vadd.f32 %v842, %v949
        %v951 = vpop.f32.mrf.mxu0
        %v952 = vpop.f32.mrf.mxu0
        %v953 = vadd.f32 %v842, %v952
        %v954 = vpop.f32.mrf.mxu0
        %955 = vmatprep.mubr.bf16.mxu0 0
        %956 = vmatmul.mubr.bf16.gmra.mxu0 %v827
        %v957 = vpop.f32.mrf.mxu0
        %v958 = vadd.f32 %v842, %v957
        %v959 = vpop.f32.mrf.mxu0
        %v960 = vpop.f32.mrf.mxu0
        %v961 = vadd.f32 %v842, %v960
        %v962 = vpop.f32.mrf.mxu0
        %963 = vmatprep.mubr.bf16.mxu0 0
        %964 = vmatmul.mubr.bf16.gmra.mxu0 %v828
        %v965 = vpop.f32.mrf.mxu0
        %v966 = vadd.f32 %v842, %v965
        %v967 = vpop.f32.mrf.mxu0
        %v968 = vpop.f32.mrf.mxu0
        %v969 = vadd.f32 %v842, %v968
        %v970 = vpop.f32.mrf.mxu0
        %971 = vmatprep.mubr.bf16.mxu0 0
        %972 = vmatmul.mubr.bf16.gmra.mxu0 %v829
        %v973 = vpop.f32.mrf.mxu0
        %v974 = vadd.f32 %v842, %v973
        %v975 = vpop.f32.mrf.mxu0
        %v976 = vpop.f32.mrf.mxu0
        %v977 = vadd.f32 %v842, %v976
        %v978 = vpop.f32.mrf.mxu0
        %979 = vmatprep.mubr.bf16.mxu0 0
        %980 = vmatmul.mubr.bf16.gmra.mxu0 %v830
        %v981 = vpop.f32.mrf.mxu0
        %v982 = vadd.f32 %v842, %v981
        %v983 = vpop.f32.mrf.mxu0
        %v984 = vpop.f32.mrf.mxu0
        %v985 = vadd.f32 %v842, %v984
        %v986 = vpop.f32.mrf.mxu0
        %987 = vmatprep.mubr.bf16.mxu0 0
        %988 = vmatmul.mubr.bf16.gmra.mxu0 %v831
        %v989 = vpop.f32.mrf.mxu0
        %v990 = vadd.f32 %v842, %v989
        %v991 = vpop.f32.mrf.mxu0
        %v992 = vpop.f32.mrf.mxu0
        %v993 = vadd.f32 %v842, %v992
        %v994 = vpop.f32.mrf.mxu0
        %995 = vmatprep.mubr.bf16.mxu0 0
        %996 = vmatmul.mubr.bf16.gmra.mxu0 %v832
        %v997 = vpop.f32.mrf.mxu0
        %v998 = vadd.f32 %v842, %v997
        %v999 = vpop.f32.mrf.mxu0
        %v1000 = vpop.f32.mrf.mxu0
        %v1001 = vadd.f32 %v842, %v1000
        %v1002 = vpop.f32.mrf.mxu0
        %1003 = vmatprep.mubr.bf16.mxu0 0
        %1004 = vmatmul.mubr.bf16.gmra.mxu0 %v833
        %v1005 = vpop.f32.mrf.mxu0
        %v1006 = vadd.f32 %v842, %v1005
        %v1007 = vpop.f32.mrf.mxu0
        %v1008 = vpop.f32.mrf.mxu0
        %v1009 = vadd.f32 %v842, %v1008
        %v1010 = vpop.f32.mrf.mxu0
        %1011 = vmatprep.mubr.bf16.mxu0 0
        %1012 = vmatmul.mubr.bf16.gmra.mxu0 %v834
        %v1013 = vpop.f32.mrf.mxu0
        %v1014 = vadd.f32 %v842, %v1013
        %v1015 = vpop.f32.mrf.mxu0
        %v1016 = vpop.f32.mrf.mxu0
        %v1017 = vadd.f32 %v842, %v1016
        %v1018 = vpop.f32.mrf.mxu0
        %1019 = vmatprep.mubr.bf16.mxu0 0
        %1020 = vmatmul.mubr.bf16.gmra.mxu0 %v835
        %v1021 = vpop.f32.mrf.mxu0
        %v1022 = vadd.f32 %v842, %v1021
        %v1023 = vpop.f32.mrf.mxu0
        %v1024 = vpop.f32.mrf.mxu0
        %v1025 = vadd.f32 %v842, %v1024
        %v1026 = vpop.f32.mrf.mxu0
        %1027 = vmatprep.mubr.bf16.mxu0 0
        %1028 = vmatmul.mubr.bf16.gmra.mxu0 %v836
        %v1029 = vpop.f32.mrf.mxu0
        %v1030 = vadd.f32 %v842, %v1029
        %v1031 = vpop.f32.mrf.mxu0
        %v1032 = vpop.f32.mrf.mxu0
        %v1033 = vadd.f32 %v842, %v1032
        %v1034 = vpop.f32.mrf.mxu0
        %1035 = vmatprep.mubr.bf16.mxu0 0
        %1036 = vmatmul.mubr.bf16.gmra.mxu0 %v837
        %v1037 = vpop.f32.mrf.mxu0
        %v1038 = vadd.f32 %v842, %v1037
        %v1039 = vpop.f32.mrf.mxu0
        %v1040 = vpop.f32.mrf.mxu0
        %v1041 = vadd.f32 %v842, %v1040
        %v1042 = vpop.f32.mrf.mxu0
        %1043 = vmatprep.mubr.bf16.mxu0 0
        %1044 = vmatmul.mubr.bf16.gmra.mxu0 %v838
        %v1045 = vpop.f32.mrf.mxu0
        %v1046 = vadd.f32 %v842, %v1045
        %v1047 = vpop.f32.mrf.mxu0
        %v1048 = vpop.f32.mrf.mxu0
        %v1049 = vadd.f32 %v842, %v1048
        %v1050 = vpop.f32.mrf.mxu0
        %1051 = vdwg.mxu0
        %s1052 = scalar_lea.vmem [#allocation3], %s822
        %1053 = vst [vmem:[%s1052] sm:$0xff] %v926
        %1054 = vst [vmem:[%s1052 + $0x8] sm:$0xff] %v929
        %1055 = vst [vmem:[%s1052 + $0x10] sm:$0xff] %v934
        %1056 = vst [vmem:[%s1052 + $0x18] sm:$0xff] %v937
        %1057 = vst [vmem:[%s1052 + $0x20] sm:$0xff] %v942
        %1058 = vst [vmem:[%s1052 + $0x28] sm:$0xff] %v945
        %1059 = vst [vmem:[%s1052 + $0x30] sm:$0xff] %v950
        %1060 = vst [vmem:[%s1052 + $0x38] sm:$0xff] %v953
        %1061 = vst [vmem:[%s1052 + $0x40] sm:$0xff] %v958
        %1062 = vst [vmem:[%s1052 + $0x48] sm:$0xff] %v961
        %1063 = vst [vmem:[%s1052 + $0x50] sm:$0xff] %v966
        %1064 = vst [vmem:[%s1052 + $0x58] sm:$0xff] %v969
        %1065 = vst [vmem:[%s1052 + $0x60] sm:$0xff] %v974
        %1066 = vst [vmem:[%s1052 + $0x68] sm:$0xff] %v977
        %1067 = vst [vmem:[%s1052 + $0x70] sm:$0xff] %v982
        %1068 = vst [vmem:[%s1052 + $0x78] sm:$0xff] %v985
        %1069 = vst [vmem:[%s1052 + $0x80] sm:$0xff] %v990
        %1070 = vst [vmem:[%s1052 + $0x88] sm:$0xff] %v993
        %1071 = vst [vmem:[%s1052 + $0x90] sm:$0xff] %v998
        %1072 = vst [vmem:[%s1052 + $0x98] sm:$0xff] %v1001
        %1073 = vst [vmem:[%s1052 + $0xa0] sm:$0xff] %v1006
        %1074 = vst [vmem:[%s1052 + $0xa8] sm:$0xff] %v1009
        %1075 = vst [vmem:[%s1052 + $0xb0] sm:$0xff] %v1014
        %1076 = vst [vmem:[%s1052 + $0xb8] sm:$0xff] %v1017
        %1077 = vst [vmem:[%s1052 + $0xc0] sm:$0xff] %v1022
        %1078 = vst [vmem:[%s1052 + $0xc8] sm:$0xff] %v1025
        %1079 = vst [vmem:[%s1052 + $0xd0] sm:$0xff] %v1030
        %1080 = vst [vmem:[%s1052 + $0xd8] sm:$0xff] %v1033
        %1081 = vst [vmem:[%s1052 + $0xe0] sm:$0xff] %v1038
        %1082 = vst [vmem:[%s1052 + $0xe8] sm:$0xff] %v1041
        %1083 = vst [vmem:[%s1052 + $0xf0] sm:$0xff] %v1046
        %1084 = vst [vmem:[%s1052 + $0xf8] sm:$0xff] %v1049
        // Predicated region
        $region54: #{tpu_custom_call.1} parent=35 // pred_check
          %p1085 = pneg %p298
        $region55: #{tpu_custom_call.1} parent=35 // pred_check_branch
          %1087 = sbr.rel (%p1085) target = $region57
        $region56: #{tpu_custom_call.1} parent=35 // pred_region
          %v1088 = vlaneseq
          %v1089 = vshrl.u32 %v1088, 7
          %v1090 = vadd.s32 %v1089, 8
          %v1091 = vadd.s32 %v1089, 16
          %v1092 = vadd.s32 %v1089, 24
          %v1093 = vadd.s32 %v1089, 32
          %v1094 = vadd.s32 %v1089, 40
          %v1095 = vadd.s32 %v1089, 48
          %v1096 = vadd.s32 %v1089, 56
          %v1097 = vadd.s32 %v1089, 64
          %v1098 = vadd.s32 %v1089, 72
          %v1099 = vadd.s32 %v1089, 80
          %v1100 = vadd.s32 %v1089, 88
          %v1101 = vadd.s32 %v1089, 96
          %v1102 = vadd.s32 %v1089, 104
          %v1103 = vadd.s32 %v1089, 112
          %v1104 = vadd.s32 %v1089, 120
          %v1105 = vadd.s32 %v1089, 128
          %v1106 = vadd.s32 %v1089, 136
          %v1107 = vadd.s32 %v1089, 144
          %v1108 = vadd.s32 %v1089, 152
          %v1109 = vadd.s32 %v1089, 160
          %v1110 = vadd.s32 %v1089, 168
          %v1111 = vadd.s32 %v1089, 176
          %v1112 = vadd.s32 %v1089, 184
          %v1113 = vadd.s32 %v1089, 192
          %v1114 = vadd.s32 %v1089, 200
          %v1115 = vadd.s32 %v1089, 208
          %v1116 = vadd.s32 %v1089, 216
          %v1117 = vadd.s32 %v1089, 224
          %v1118 = vadd.s32 %v1089, 232
          %v1119 = vadd.s32 %v1089, 240
          %v1120 = vadd.s32 %v1089, 248
          %vm1121 = vcmp.lt.s32.totalorder %v1089, 200
          %vm1122 = vcmp.lt.s32.totalorder %v1090, 200
          %vm1123 = vcmp.lt.s32.totalorder %v1091, 200
          %vm1124 = vcmp.lt.s32.totalorder %v1092, 200
          %vm1125 = vcmp.lt.s32.totalorder %v1093, 200
          %vm1126 = vcmp.lt.s32.totalorder %v1094, 200
          %vm1127 = vcmp.lt.s32.totalorder %v1095, 200
          %vm1128 = vcmp.lt.s32.totalorder %v1096, 200
          %vm1129 = vcmp.lt.s32.totalorder %v1097, 200
          %vm1130 = vcmp.lt.s32.totalorder %v1098, 200
          %vm1131 = vcmp.lt.s32.totalorder %v1099, 200
          %vm1132 = vcmp.lt.s32.totalorder %v1100, 200
          %vm1133 = vcmp.lt.s32.totalorder %v1101, 200
          %vm1134 = vcmp.lt.s32.totalorder %v1102, 200
          %vm1135 = vcmp.lt.s32.totalorder %v1103, 200
          %vm1136 = vcmp.lt.s32.totalorder %v1104, 200
          %vm1137 = vcmp.lt.s32.totalorder %v1105, 200
          %vm1138 = vcmp.lt.s32.totalorder %v1106, 200
          %vm1139 = vcmp.lt.s32.totalorder %v1107, 200
          %vm1140 = vcmp.lt.s32.totalorder %v1108, 200
          %vm1141 = vcmp.lt.s32.totalorder %v1109, 200
          %vm1142 = vcmp.lt.s32.totalorder %v1110, 200
          %vm1143 = vcmp.lt.s32.totalorder %v1111, 200
          %vm1144 = vcmp.lt.s32.totalorder %v1112, 200
          %vm1145 = vcmp.lt.s32.totalorder %v1113, 200
          %vm1146 = vcmp.lt.s32.totalorder %v1114, 200
          %vm1147 = vcmp.lt.s32.totalorder %v1115, 200
          %vm1148 = vcmp.lt.s32.totalorder %v1116, 200
          %vm1149 = vcmp.lt.s32.totalorder %v1117, 200
          %vm1150 = vcmp.lt.s32.totalorder %v1118, 200
          %vm1151 = vcmp.lt.s32.totalorder %v1119, 200
          %vm1152 = vcmp.lt.s32.totalorder %v1120, 200
          %v1153 = vsel %vm1121, 1, 0
          %v1154 = vsel %vm1122, 1, 0
          %v1155 = vsel %vm1123, 1, 0
          %v1156 = vsel %vm1124, 1, 0
          %v1157 = vsel %vm1125, 1, 0
          %v1158 = vsel %vm1126, 1, 0
          %v1159 = vsel %vm1127, 1, 0
          %v1160 = vsel %vm1128, 1, 0
          %v1161 = vsel %vm1129, 1, 0
          %v1162 = vsel %vm1130, 1, 0
          %v1163 = vsel %vm1131, 1, 0
          %v1164 = vsel %vm1132, 1, 0
          %v1165 = vsel %vm1133, 1, 0
          %v1166 = vsel %vm1134, 1, 0
          %v1167 = vsel %vm1135, 1, 0
          %v1168 = vsel %vm1136, 1, 0
          %v1169 = vsel %vm1137, 1, 0
          %v1170 = vsel %vm1138, 1, 0
          %v1171 = vsel %vm1139, 1, 0
          %v1172 = vsel %vm1140, 1, 0
          %v1173 = vsel %vm1141, 1, 0
          %v1174 = vsel %vm1142, 1, 0
          %v1175 = vsel %vm1143, 1, 0
          %v1176 = vsel %vm1144, 1, 0
          %v1177 = vsel %vm1145, 1, 0
          %v1178 = vsel %vm1146, 1, 0
          %v1179 = vsel %vm1147, 1, 0
          %v1180 = vsel %vm1148, 1, 0
          %v1181 = vsel %vm1149, 1, 0
          %v1182 = vsel %vm1150, 1, 0
          %v1183 = vsel %vm1151, 1, 0
          %v1184 = vsel %vm1152, 1, 0
          %v1185 = vcvt.s32.f32 %v1153
          %v1186 = vcvt.s32.f32 %v1154
          %v1187 = vcvt.s32.f32 %v1155
          %v1188 = vcvt.s32.f32 %v1156
          %v1189 = vcvt.s32.f32 %v1157
          %v1190 = vcvt.s32.f32 %v1158
          %v1191 = vcvt.s32.f32 %v1159
          %v1192 = vcvt.s32.f32 %v1160
          %v1193 = vcvt.s32.f32 %v1161
          %v1194 = vcvt.s32.f32 %v1162
          %v1195 = vcvt.s32.f32 %v1163
          %v1196 = vcvt.s32.f32 %v1164
          %v1197 = vcvt.s32.f32 %v1165
          %v1198 = vcvt.s32.f32 %v1166
          %v1199 = vcvt.s32.f32 %v1167
          %v1200 = vcvt.s32.f32 %v1168
          %v1201 = vcvt.s32.f32 %v1169
          %v1202 = vcvt.s32.f32 %v1170
          %v1203 = vcvt.s32.f32 %v1171
          %v1204 = vcvt.s32.f32 %v1172
          %v1205 = vcvt.s32.f32 %v1173
          %v1206 = vcvt.s32.f32 %v1174
          %v1207 = vcvt.s32.f32 %v1175
          %v1208 = vcvt.s32.f32 %v1176
          %v1209 = vcvt.s32.f32 %v1177
          %v1210 = vcvt.s32.f32 %v1178
          %v1211 = vcvt.s32.f32 %v1179
          %v1212 = vcvt.s32.f32 %v1180
          %v1213 = vcvt.s32.f32 %v1181
          %v1214 = vcvt.s32.f32 %v1182
          %v1215 = vcvt.s32.f32 %v1183
          %v1216 = vcvt.s32.f32 %v1184
          %v1217 = vld [vmem:[#allocation3] sm:$0xff]
          %v1218 = vld [vmem:[#allocation3 + $0x8] sm:$0xff]
          %v1219 = vld [vmem:[#allocation3 + $0x10] sm:$0xff]
          %v1220 = vld [vmem:[#allocation3 + $0x18] sm:$0xff]
          %v1221 = vld [vmem:[#allocation3 + $0x20] sm:$0xff]
          %v1222 = vld [vmem:[#allocation3 + $0x28] sm:$0xff]
          %v1223 = vld [vmem:[#allocation3 + $0x30] sm:$0xff]
          %v1224 = vld [vmem:[#allocation3 + $0x38] sm:$0xff]
          %v1225 = vld [vmem:[#allocation3 + $0x40] sm:$0xff]
          %v1226 = vld [vmem:[#allocation3 + $0x48] sm:$0xff]
          %v1227 = vld [vmem:[#allocation3 + $0x50] sm:$0xff]
          %v1228 = vld [vmem:[#allocation3 + $0x58] sm:$0xff]
          %v1229 = vld [vmem:[#allocation3 + $0x60] sm:$0xff]
          %v1230 = vld [vmem:[#allocation3 + $0x68] sm:$0xff]
          %v1231 = vld [vmem:[#allocation3 + $0x70] sm:$0xff]
          %v1232 = vld [vmem:[#allocation3 + $0x78] sm:$0xff]
          %v1233 = vld [vmem:[#allocation3 + $0x80] sm:$0xff]
          %v1234 = vld [vmem:[#allocation3 + $0x88] sm:$0xff]
          %v1235 = vld [vmem:[#allocation3 + $0x90] sm:$0xff]
          %v1236 = vld [vmem:[#allocation3 + $0x98] sm:$0xff]
          %v1237 = vld [vmem:[#allocation3 + $0xa0] sm:$0xff]
          %v1238 = vld [vmem:[#allocation3 + $0xa8] sm:$0xff]
          %v1239 = vld [vmem:[#allocation3 + $0xb0] sm:$0xff]
          %v1240 = vld [vmem:[#allocation3 + $0xb8] sm:$0xff]
          %v1241 = vld [vmem:[#allocation3 + $0xc0] sm:$0xff]
          %v1242 = vld [vmem:[#allocation3 + $0xc8] sm:$0xff]
          %v1243 = vld [vmem:[#allocation3 + $0xd0] sm:$0xff]
          %v1244 = vld [vmem:[#allocation3 + $0xd8] sm:$0xff]
          %v1245 = vld [vmem:[#allocation3 + $0xe0] sm:$0xff]
          %v1246 = vld [vmem:[#allocation3 + $0xe8] sm:$0xff]
          %v1247 = vld [vmem:[#allocation3 + $0xf0] sm:$0xff]
          %v1248 = vld [vmem:[#allocation3 + $0xf8] sm:$0xff]
          %v1249 = vld [vmem:[%s295 + $0x1] sm:$0x1]
          %v1250 = vld [vmem:[%s295 + $0x2] sm:$0x1]
          %v1251 = vmul.f32 %v1217, %v1185
          %v1252 = vmul.f32 %v1218, %v1186
          %v1253 = vmul.f32 %v1219, %v1187
          %v1254 = vmul.f32 %v1220, %v1188
          %v1255 = vmul.f32 %v1221, %v1189
          %v1256 = vmul.f32 %v1222, %v1190
          %v1257 = vmul.f32 %v1223, %v1191
          %v1258 = vmul.f32 %v1224, %v1192
          %v1259 = vmul.f32 %v1225, %v1193
          %v1260 = vmul.f32 %v1226, %v1194
          %v1261 = vmul.f32 %v1227, %v1195
          %v1262 = vmul.f32 %v1228, %v1196
          %v1263 = vmul.f32 %v1229, %v1197
          %v1264 = vmul.f32 %v1230, %v1198
          %v1265 = vmul.f32 %v1231, %v1199
          %v1266 = vmul.f32 %v1232, %v1200
          %v1267 = vmul.f32 %v1233, %v1201
          %v1268 = vmul.f32 %v1234, %v1202
          %v1269 = vmul.f32 %v1235, %v1203
          %v1270 = vmul.f32 %v1236, %v1204
          %v1271 = vmul.f32 %v1237, %v1205
          %v1272 = vmul.f32 %v1238, %v1206
          %v1273 = vmul.f32 %v1239, %v1207
          %v1274 = vmul.f32 %v1240, %v1208
          %v1275 = vmul.f32 %v1241, %v1209
          %v1276 = vmul.f32 %v1242, %v1210
          %v1277 = vmul.f32 %v1243, %v1211
          %v1278 = vmul.f32 %v1244, %v1212
          %v1279 = vmul.f32 %v1245, %v1213
          %v1280 = vmul.f32 %v1246, %v1214
          %v1281 = vmul.f32 %v1247, %v1215
          %v1282 = vmul.f32 %v1248, %v1216
          %v1283 = vadd.f32 %v1251, %v1252
          %v1284 = vadd.f32 %v1283, %v1253
          %v1285 = vadd.f32 %v1284, %v1254
          %v1286 = vadd.f32 %v1285, %v1255
          %v1287 = vadd.f32 %v1286, %v1256
          %v1288 = vadd.f32 %v1287, %v1257
          %v1289 = vadd.f32 %v1288, %v1258
          %v1290 = vadd.f32 %v1289, %v1259
          %v1291 = vadd.f32 %v1290, %v1260
          %v1292 = vadd.f32 %v1291, %v1261
          %v1293 = vadd.f32 %v1292, %v1262
          %v1294 = vadd.f32 %v1293, %v1263
          %v1295 = vadd.f32 %v1294, %v1264
          %v1296 = vadd.f32 %v1295, %v1265
          %v1297 = vadd.f32 %v1296, %v1266
          %v1298 = vadd.f32 %v1297, %v1267
          %v1299 = vadd.f32 %v1298, %v1268
          %v1300 = vadd.f32 %v1299, %v1269
          %v1301 = vadd.f32 %v1300, %v1270
          %v1302 = vadd.f32 %v1301, %v1271
          %v1303 = vadd.f32 %v1302, %v1272
          %v1304 = vadd.f32 %v1303, %v1273
          %v1305 = vadd.f32 %v1304, %v1274
          %v1306 = vadd.f32 %v1305, %v1275
          %v1307 = vadd.f32 %v1306, %v1276
          %v1308 = vadd.f32 %v1307, %v1277
          %v1309 = vadd.f32 %v1308, %v1278
          %v1310 = vadd.f32 %v1309, %v1279
          %v1311 = vadd.f32 %v1310, %v1280
          %v1312 = vadd.f32 %v1311, %v1281
          %v1313 = vadd.f32 %v1312, %v1282
          %v1314 = vrot.slane %v1313, 4
          %v1315 = vadd.f32 %v1313, %v1314
          %v1316 = vrot.slane %v1315, 2
          %v1317 = vadd.f32 %v1315, %v1316
          %v1318 = vrot.slane %v1317, 1
          %v1319 = vadd.f32 %v1317, %v1318
          %v1320 = vmul.f32 %v1319, 0.005
          %v1321 = vsub.f32 %v1217, %v1320
          %v1322 = vsub.f32 %v1218, %v1320
          %v1323 = vsub.f32 %v1219, %v1320
          %v1324 = vsub.f32 %v1220, %v1320
          %v1325 = vsub.f32 %v1221, %v1320
          %v1326 = vsub.f32 %v1222, %v1320
          %v1327 = vsub.f32 %v1223, %v1320
          %v1328 = vsub.f32 %v1224, %v1320
          %v1329 = vsub.f32 %v1225, %v1320
          %v1330 = vsub.f32 %v1226, %v1320
          %v1331 = vsub.f32 %v1227, %v1320
          %v1332 = vsub.f32 %v1228, %v1320
          %v1333 = vsub.f32 %v1229, %v1320
          %v1334 = vsub.f32 %v1230, %v1320
          %v1335 = vsub.f32 %v1231, %v1320
          %v1336 = vsub.f32 %v1232, %v1320
          %v1337 = vsub.f32 %v1233, %v1320
          %v1338 = vsub.f32 %v1234, %v1320
          %v1339 = vsub.f32 %v1235, %v1320
          %v1340 = vsub.f32 %v1236, %v1320
          %v1341 = vsub.f32 %v1237, %v1320
          %v1342 = vsub.f32 %v1238, %v1320
          %v1343 = vsub.f32 %v1239, %v1320
          %v1344 = vsub.f32 %v1240, %v1320
          %v1345 = vsub.f32 %v1241, %v1320
          %v1346 = vsub.f32 %v1242, %v1320
          %v1347 = vsub.f32 %v1243, %v1320
          %v1348 = vsub.f32 %v1244, %v1320
          %v1349 = vsub.f32 %v1245, %v1320
          %v1350 = vsub.f32 %v1246, %v1320
          %v1351 = vsub.f32 %v1247, %v1320
          %v1352 = vsub.f32 %v1248, %v1320
          %v1353 = vmul.f32 %v1321, %v1185
          %v1354 = vmul.f32 %v1322, %v1186
          %v1355 = vmul.f32 %v1323, %v1187
          %v1356 = vmul.f32 %v1324, %v1188
          %v1357 = vmul.f32 %v1325, %v1189
          %v1358 = vmul.f32 %v1326, %v1190
          %v1359 = vmul.f32 %v1327, %v1191
          %v1360 = vmul.f32 %v1328, %v1192
          %v1361 = vmul.f32 %v1329, %v1193
          %v1362 = vmul.f32 %v1330, %v1194
          %v1363 = vmul.f32 %v1331, %v1195
          %v1364 = vmul.f32 %v1332, %v1196
          %v1365 = vmul.f32 %v1333, %v1197
          %v1366 = vmul.f32 %v1334, %v1198
          %v1367 = vmul.f32 %v1335, %v1199
          %v1368 = vmul.f32 %v1336, %v1200
          %v1369 = vmul.f32 %v1337, %v1201
          %v1370 = vmul.f32 %v1338, %v1202
          %v1371 = vmul.f32 %v1339, %v1203
          %v1372 = vmul.f32 %v1340, %v1204
          %v1373 = vmul.f32 %v1341, %v1205
          %v1374 = vmul.f32 %v1342, %v1206
          %v1375 = vmul.f32 %v1343, %v1207
          %v1376 = vmul.f32 %v1344, %v1208
          %v1377 = vmul.f32 %v1345, %v1209
          %v1378 = vmul.f32 %v1346, %v1210
          %v1379 = vmul.f32 %v1347, %v1211
          %v1380 = vmul.f32 %v1348, %v1212
          %v1381 = vmul.f32 %v1349, %v1213
          %v1382 = vmul.f32 %v1350, %v1214
          %v1383 = vmul.f32 %v1351, %v1215
          %v1384 = vmul.f32 %v1352, %v1216
          %v1385 = vmul.f32 %v1353, %v1353
          %v1386 = vmul.f32 %v1354, %v1354
          %v1387 = vmul.f32 %v1355, %v1355
          %v1388 = vmul.f32 %v1356, %v1356
          %v1389 = vmul.f32 %v1357, %v1357
          %v1390 = vmul.f32 %v1358, %v1358
          %v1391 = vmul.f32 %v1359, %v1359
          %v1392 = vmul.f32 %v1360, %v1360
          %v1393 = vmul.f32 %v1361, %v1361
          %v1394 = vmul.f32 %v1362, %v1362
          %v1395 = vmul.f32 %v1363, %v1363
          %v1396 = vmul.f32 %v1364, %v1364
          %v1397 = vmul.f32 %v1365, %v1365
          %v1398 = vmul.f32 %v1366, %v1366
          %v1399 = vmul.f32 %v1367, %v1367
          %v1400 = vmul.f32 %v1368, %v1368
          %v1401 = vmul.f32 %v1369, %v1369
          %v1402 = vmul.f32 %v1370, %v1370
          %v1403 = vmul.f32 %v1371, %v1371
          %v1404 = vmul.f32 %v1372, %v1372
          %v1405 = vmul.f32 %v1373, %v1373
          %v1406 = vmul.f32 %v1374, %v1374
          %v1407 = vmul.f32 %v1375, %v1375
          %v1408 = vmul.f32 %v1376, %v1376
          %v1409 = vmul.f32 %v1377, %v1377
          %v1410 = vmul.f32 %v1378, %v1378
          %v1411 = vmul.f32 %v1379, %v1379
          %v1412 = vmul.f32 %v1380, %v1380
          %v1413 = vmul.f32 %v1381, %v1381
          %v1414 = vmul.f32 %v1382, %v1382
          %v1415 = vmul.f32 %v1383, %v1383
          %v1416 = vmul.f32 %v1384, %v1384
          %v1417 = vadd.f32 %v1385, %v1386
          %v1418 = vadd.f32 %v1417, %v1387
          %v1419 = vadd.f32 %v1418, %v1388
          %v1420 = vadd.f32 %v1419, %v1389
          %v1421 = vadd.f32 %v1420, %v1390
          %v1422 = vadd.f32 %v1421, %v1391
          %v1423 = vadd.f32 %v1422, %v1392
          %v1424 = vadd.f32 %v1423, %v1393
          %v1425 = vadd.f32 %v1424, %v1394
          %v1426 = vadd.f32 %v1425, %v1395
          %v1427 = vadd.f32 %v1426, %v1396
          %v1428 = vadd.f32 %v1427, %v1397
          %v1429 = vadd.f32 %v1428, %v1398
          %v1430 = vadd.f32 %v1429, %v1399
          %v1431 = vadd.f32 %v1430, %v1400
          %v1432 = vadd.f32 %v1431, %v1401
          %v1433 = vadd.f32 %v1432, %v1402
          %v1434 = vadd.f32 %v1433, %v1403
          %v1435 = vadd.f32 %v1434, %v1404
          %v1436 = vadd.f32 %v1435, %v1405
          %v1437 = vadd.f32 %v1436, %v1406
          %v1438 = vadd.f32 %v1437, %v1407
          %v1439 = vadd.f32 %v1438, %v1408
          %v1440 = vadd.f32 %v1439, %v1409
          %v1441 = vadd.f32 %v1440, %v1410
          %v1442 = vadd.f32 %v1441, %v1411
          %v1443 = vadd.f32 %v1442, %v1412
          %v1444 = vadd.f32 %v1443, %v1413
          %v1445 = vadd.f32 %v1444, %v1414
          %v1446 = vadd.f32 %v1445, %v1415
          %v1447 = vadd.f32 %v1446, %v1416
          %v1448 = vrot.slane %v1447, 4
          %v1449 = vadd.f32 %v1447, %v1448
          %v1450 = vrot.slane %v1449, 2
          %v1451 = vadd.f32 %v1449, %v1450
          %v1452 = vrot.slane %v1451, 1
          %v1453 = vadd.f32 %v1451, %v1452
          %v1454 = vmul.f32 %v1453, 0.005
          %v1455 = vadd.f32 %v1454, 1e-05
          %v1456 = vrsqrt.pop %v1455
          %v1457 = vmul.f32 %v1321, %v1456
          %v1458 = vmul.f32 %v1322, %v1456
          %v1459 = vmul.f32 %v1323, %v1456
          %v1460 = vmul.f32 %v1324, %v1456
          %v1461 = vmul.f32 %v1325, %v1456
          %v1462 = vmul.f32 %v1326, %v1456
          %v1463 = vmul.f32 %v1327, %v1456
          %v1464 = vmul.f32 %v1328, %v1456
          %v1465 = vmul.f32 %v1329, %v1456
          %v1466 = vmul.f32 %v1330, %v1456
          %v1467 = vmul.f32 %v1331, %v1456
          %v1468 = vmul.f32 %v1332, %v1456
          %v1469 = vmul.f32 %v1333, %v1456
          %v1470 = vmul.f32 %v1334, %v1456
          %v1471 = vmul.f32 %v1335, %v1456
          %v1472 = vmul.f32 %v1336, %v1456
          %v1473 = vmul.f32 %v1337, %v1456
          %v1474 = vmul.f32 %v1338, %v1456
          %v1475 = vmul.f32 %v1339, %v1456
          %v1476 = vmul.f32 %v1340, %v1456
          %v1477 = vmul.f32 %v1341, %v1456
          %v1478 = vmul.f32 %v1342, %v1456
          %v1479 = vmul.f32 %v1343, %v1456
          %v1480 = vmul.f32 %v1344, %v1456
          %v1481 = vmul.f32 %v1345, %v1456
          %v1482 = vmul.f32 %v1346, %v1456
          %v1483 = vmul.f32 %v1347, %v1456
          %v1484 = vmul.f32 %v1348, %v1456
          %v1485 = vmul.f32 %v1349, %v1456
          %v1486 = vmul.f32 %v1350, %v1456
          %v1487 = vmul.f32 %v1351, %v1456
          %v1488 = vmul.f32 %v1352, %v1456
          %v1489 = vlaneseq
          %v1490 = vshrl.u32 %v1489, 7
          %v1491 = vsub.s32 0, %v1490
          %v1492 = vrot.slane %v1249, %v1491
          %v1493 = vmul.f32 %v1457, %v1492
          %v1494 = vmul.f32 %v1458, %v1492
          %v1495 = vmul.f32 %v1459, %v1492
          %v1496 = vmul.f32 %v1460, %v1492
          %v1497 = vmul.f32 %v1461, %v1492
          %v1498 = vmul.f32 %v1462, %v1492
          %v1499 = vmul.f32 %v1463, %v1492
          %v1500 = vmul.f32 %v1464, %v1492
          %v1501 = vmul.f32 %v1465, %v1492
          %v1502 = vmul.f32 %v1466, %v1492
          %v1503 = vmul.f32 %v1467, %v1492
          %v1504 = vmul.f32 %v1468, %v1492
          %v1505 = vmul.f32 %v1469, %v1492
          %v1506 = vmul.f32 %v1470, %v1492
          %v1507 = vmul.f32 %v1471, %v1492
          %v1508 = vmul.f32 %v1472, %v1492
          %v1509 = vmul.f32 %v1473, %v1492
          %v1510 = vmul.f32 %v1474, %v1492
          %v1511 = vmul.f32 %v1475, %v1492
          %v1512 = vmul.f32 %v1476, %v1492
          %v1513 = vmul.f32 %v1477, %v1492
          %v1514 = vmul.f32 %v1478, %v1492
          %v1515 = vmul.f32 %v1479, %v1492
          %v1516 = vmul.f32 %v1480, %v1492
          %v1517 = vmul.f32 %v1481, %v1492
          %v1518 = vmul.f32 %v1482, %v1492
          %v1519 = vmul.f32 %v1483, %v1492
          %v1520 = vmul.f32 %v1484, %v1492
          %v1521 = vmul.f32 %v1485, %v1492
          %v1522 = vmul.f32 %v1486, %v1492
          %v1523 = vmul.f32 %v1487, %v1492
          %v1524 = vmul.f32 %v1488, %v1492
          %v1525 = vlaneseq
          %v1526 = vshrl.u32 %v1525, 7
          %v1527 = vsub.s32 0, %v1526
          %v1528 = vrot.slane %v1250, %v1527
          %v1529 = vadd.f32 %v1493, %v1528
          %v1530 = vadd.f32 %v1494, %v1528
          %v1531 = vadd.f32 %v1495, %v1528
          %v1532 = vadd.f32 %v1496, %v1528
          %v1533 = vadd.f32 %v1497, %v1528
          %v1534 = vadd.f32 %v1498, %v1528
          %v1535 = vadd.f32 %v1499, %v1528
          %v1536 = vadd.f32 %v1500, %v1528
          %v1537 = vadd.f32 %v1501, %v1528
          %v1538 = vadd.f32 %v1502, %v1528
          %v1539 = vadd.f32 %v1503, %v1528
          %v1540 = vadd.f32 %v1504, %v1528
          %v1541 = vadd.f32 %v1505, %v1528
          %v1542 = vadd.f32 %v1506, %v1528
          %v1543 = vadd.f32 %v1507, %v1528
          %v1544 = vadd.f32 %v1508, %v1528
          %v1545 = vadd.f32 %v1509, %v1528
          %v1546 = vadd.f32 %v1510, %v1528
          %v1547 = vadd.f32 %v1511, %v1528
          %v1548 = vadd.f32 %v1512, %v1528
          %v1549 = vadd.f32 %v1513, %v1528
          %v1550 = vadd.f32 %v1514, %v1528
          %v1551 = vadd.f32 %v1515, %v1528
          %v1552 = vadd.f32 %v1516, %v1528
          %v1553 = vadd.f32 %v1517, %v1528
          %v1554 = vadd.f32 %v1518, %v1528
          %v1555 = vadd.f32 %v1519, %v1528
          %v1556 = vadd.f32 %v1520, %v1528
          %v1557 = vadd.f32 %v1521, %v1528
          %v1558 = vadd.f32 %v1522, %v1528
          %v1559 = vadd.f32 %v1523, %v1528
          %v1560 = vadd.f32 %v1524, %v1528
          %v1561 = vmax.f32 %v1529, 0.0
          %v1562 = vmax.f32 %v1530, 0.0
          %v1563 = vmax.f32 %v1531, 0.0
          %v1564 = vmax.f32 %v1532, 0.0
          %v1565 = vmax.f32 %v1533, 0.0
          %v1566 = vmax.f32 %v1534, 0.0
          %v1567 = vmax.f32 %v1535, 0.0
          %v1568 = vmax.f32 %v1536, 0.0
          %v1569 = vmax.f32 %v1537, 0.0
          %v1570 = vmax.f32 %v1538, 0.0
          %v1571 = vmax.f32 %v1539, 0.0
          %v1572 = vmax.f32 %v1540, 0.0
          %v1573 = vmax.f32 %v1541, 0.0
          %v1574 = vmax.f32 %v1542, 0.0
          %v1575 = vmax.f32 %v1543, 0.0
          %v1576 = vmax.f32 %v1544, 0.0
          %v1577 = vmax.f32 %v1545, 0.0
          %v1578 = vmax.f32 %v1546, 0.0
          %v1579 = vmax.f32 %v1547, 0.0
          %v1580 = vmax.f32 %v1548, 0.0
          %v1581 = vmax.f32 %v1549, 0.0
          %v1582 = vmax.f32 %v1550, 0.0
          %v1583 = vmax.f32 %v1551, 0.0
          %v1584 = vmax.f32 %v1552, 0.0
          %v1585 = vmax.f32 %v1553, 0.0
          %v1586 = vmax.f32 %v1554, 0.0
          %v1587 = vmax.f32 %v1555, 0.0
          %v1588 = vmax.f32 %v1556, 0.0
          %v1589 = vmax.f32 %v1557, 0.0
          %v1590 = vmax.f32 %v1558, 0.0
          %v1591 = vmax.f32 %v1559, 0.0
          %v1592 = vmax.f32 %v1560, 0.0
          %v1593 = vld [vmem:[%s263 + $0x40] sm:$0xf]
          %v1594 = vld [vmem:[%s263 + $0x44] sm:$0xf]
          %v1595 = vld [vmem:[%s263 + $0x48] sm:$0xf]
          %v1596 = vld [vmem:[%s263 + $0x4c] sm:$0xf]
          %v1597 = vld [vmem:[%s263 + $0x50] sm:$0xf]
          %v1598 = vld [vmem:[%s263 + $0x54] sm:$0xf]
          %v1599 = vld [vmem:[%s263 + $0x58] sm:$0xf]
          %v1600 = vld [vmem:[%s263 + $0x5c] sm:$0xf]
          %v1601 = vld [vmem:[%s263 + $0x60] sm:$0xf]
          %v1602 = vld [vmem:[%s263 + $0x64] sm:$0xf]
          %v1603 = vld [vmem:[%s263 + $0x68] sm:$0xf]
          %v1604 = vld [vmem:[%s263 + $0x6c] sm:$0xf]
          %v1605 = vld [vmem:[%s263 + $0x70] sm:$0xf]
          %v1606 = vld [vmem:[%s263 + $0x74] sm:$0xf]
          %v1607 = vld [vmem:[%s263 + $0x78] sm:$0xf]
          %v1608 = vld [vmem:[%s263 + $0x7c] sm:$0xf]
          %v1609 = vld [vmem:[%s295 + $0x3] sm:$0x1]
          %v1610 = vpack.c.bf16 %v1562, %v1561
          %v1611 = vpack.c.bf16 %v1564, %v1563
          %v1612 = vpack.c.bf16 %v1566, %v1565
          %v1613 = vpack.c.bf16 %v1568, %v1567
          %v1614 = vpack.c.bf16 %v1570, %v1569
          %v1615 = vpack.c.bf16 %v1572, %v1571
          %v1616 = vpack.c.bf16 %v1574, %v1573
          %v1617 = vpack.c.bf16 %v1576, %v1575
          %v1618 = vpack.c.bf16 %v1578, %v1577
          %v1619 = vpack.c.bf16 %v1580, %v1579
          %v1620 = vpack.c.bf16 %v1582, %v1581
          %v1621 = vpack.c.bf16 %v1584, %v1583
          %v1622 = vpack.c.bf16 %v1586, %v1585
          %v1623 = vpack.c.bf16 %v1588, %v1587
          %v1624 = vpack.c.bf16 %v1590, %v1589
          %v1625 = vpack.c.bf16 %v1592, %v1591
          %v1626 = vlaneseq
          %v1627 = vshrl.u32 %v1626, 7
          %v1628 = vsub.s32 0, %v1627
          %v1629 = vrot.slane %v1609, %v1628
          %v1646 = vunpack.c.l.b16 %v1593
          %v1647 = vunpack.c.l.b16 %v1594
          %v1648 = vunpack.c.l.b16 %v1595
          %v1649 = vunpack.c.l.b16 %v1596
          %v1650 = vunpack.c.l.b16 %v1597
          %v1651 = vunpack.c.l.b16 %v1598
          %v1652 = vunpack.c.l.b16 %v1599
          %v1653 = vunpack.c.l.b16 %v1600
          %v1654 = vunpack.c.l.b16 %v1601
          %v1655 = vunpack.c.l.b16 %v1602
          %v1656 = vunpack.c.l.b16 %v1603
          %v1657 = vunpack.c.l.b16 %v1604
          %v1658 = vunpack.c.l.b16 %v1605
          %v1659 = vunpack.c.l.b16 %v1606
          %v1660 = vunpack.c.l.b16 %v1607
          %v1661 = vunpack.c.l.b16 %v1608
          %v1662 = vpack.c.b16 %v1647, %v1646
          %v1663 = vpack.c.b16 %v1649, %v1648
          %v1664 = vpack.c.b16 %v1651, %v1650
          %v1665 = vpack.c.b16 %v1653, %v1652
          %v1666 = vpack.c.b16 %v1655, %v1654
          %v1667 = vpack.c.b16 %v1657, %v1656
          %v1668 = vpack.c.b16 %v1659, %v1658
          %v1669 = vpack.c.b16 %v1661, %v1660
          %1678 = vmatprep.subr.bf16.mxu0 0
          %1679 = vmatpush1.bf16.msra.mxu0 %v1669
          %1680 = vmatprep.subr.bf16.mxu0 0
          %1681 = vmatpush1.bf16.msra.mxu0 %v1668
          %1682 = vmatprep.subr.bf16.mxu0 0
          %1683 = vmatpush1.bf16.msra.mxu0 %v1667
          %1684 = vmatprep.subr.bf16.mxu0 0
          %1685 = vmatpush1.bf16.msra.mxu0 %v1666
          %1686 = vmatprep.subr.bf16.mxu0 0
          %1687 = vmatpush1.bf16.msra.mxu0 %v1665
          %1688 = vmatprep.subr.bf16.mxu0 0
          %1689 = vmatpush1.bf16.msra.mxu0 %v1664
          %1690 = vmatprep.subr.bf16.mxu0 0
          %1691 = vmatpush1.bf16.msra.mxu0 %v1663
          %1692 = vmatprep.subr.bf16.mxu0 0
          %1693 = vmatpush1.bf16.msra.mxu0 %v1662
          %1694 = vmatprep.subr.bf16.mxu0 0
          %1695 = vmatpush2.bf16.msra.mxu0 0
          %1696 = vmatprep.subr.bf16.mxu0 0
          %1697 = vmatpush2.bf16.msra.mxu0 0
          %1698 = vmatprep.subr.bf16.mxu0 0
          %1699 = vmatpush2.bf16.msra.mxu0 0
          %1700 = vmatprep.subr.bf16.mxu0 0
          %1701 = vmatpush2.bf16.msra.mxu0 0
          %1702 = vmatprep.subr.bf16.mxu0 0
          %1703 = vmatpush2.bf16.msra.mxu0 0
          %1704 = vmatprep.subr.bf16.mxu0 0
          %1705 = vmatpush2.bf16.msra.mxu0 0
          %1706 = vmatprep.subr.bf16.mxu0 0
          %1707 = vmatpush2.bf16.msra.mxu0 0
          %1708 = vmatprep.subr.bf16.mxu0 0
          %1709 = vmatpush2.bf16.msra.mxu0 0
          %1710 = vmatprep.mubr.bf16.mxu0 0
          %1711 = vmatmul.mubr.bf16.gmra.mxu0 %v1610
          %v1712 = vpop.f32.mrf.mxu0
          %v1713 = vadd.f32 %v1629, %v1712
          %v1714 = vpop.f32.mrf.mxu0
          %v1715 = vpop.f32.mrf.mxu0
          %v1716 = vadd.f32 %v1629, %v1715
          %v1717 = vpop.f32.mrf.mxu0
          %1718 = vmatprep.mubr.bf16.mxu0 0
          %1719 = vmatmul.mubr.bf16.gmra.mxu0 %v1611
          %v1720 = vpop.f32.mrf.mxu0
          %v1721 = vadd.f32 %v1629, %v1720
          %v1722 = vpop.f32.mrf.mxu0
          %v1723 = vpop.f32.mrf.mxu0
          %v1724 = vadd.f32 %v1629, %v1723
          %v1725 = vpop.f32.mrf.mxu0
          %1726 = vmatprep.mubr.bf16.mxu0 0
          %1727 = vmatmul.mubr.bf16.gmra.mxu0 %v1612
          %v1728 = vpop.f32.mrf.mxu0
          %v1729 = vadd.f32 %v1629, %v1728
          %v1730 = vpop.f32.mrf.mxu0
          %v1731 = vpop.f32.mrf.mxu0
          %v1732 = vadd.f32 %v1629, %v1731
          %v1733 = vpop.f32.mrf.mxu0
          %1734 = vmatprep.mubr.bf16.mxu0 0
          %1735 = vmatmul.mubr.bf16.gmra.mxu0 %v1613
          %v1736 = vpop.f32.mrf.mxu0
          %v1737 = vadd.f32 %v1629, %v1736
          %v1738 = vpop.f32.mrf.mxu0
          %v1739 = vpop.f32.mrf.mxu0
          %v1740 = vadd.f32 %v1629, %v1739
          %v1741 = vpop.f32.mrf.mxu0
          %1742 = vmatprep.mubr.bf16.mxu0 0
          %1743 = vmatmul.mubr.bf16.gmra.mxu0 %v1614
          %v1744 = vpop.f32.mrf.mxu0
          %v1745 = vadd.f32 %v1629, %v1744
          %v1746 = vpop.f32.mrf.mxu0
          %v1747 = vpop.f32.mrf.mxu0
          %v1748 = vadd.f32 %v1629, %v1747
          %v1749 = vpop.f32.mrf.mxu0
          %1750 = vmatprep.mubr.bf16.mxu0 0
          %1751 = vmatmul.mubr.bf16.gmra.mxu0 %v1615
          %v1752 = vpop.f32.mrf.mxu0
          %v1753 = vadd.f32 %v1629, %v1752
          %v1754 = vpop.f32.mrf.mxu0
          %v1755 = vpop.f32.mrf.mxu0
          %v1756 = vadd.f32 %v1629, %v1755
          %v1757 = vpop.f32.mrf.mxu0
          %1758 = vmatprep.mubr.bf16.mxu0 0
          %1759 = vmatmul.mubr.bf16.gmra.mxu0 %v1616
          %v1760 = vpop.f32.mrf.mxu0
          %v1761 = vadd.f32 %v1629, %v1760
          %v1762 = vpop.f32.mrf.mxu0
          %v1763 = vpop.f32.mrf.mxu0
          %v1764 = vadd.f32 %v1629, %v1763
          %v1765 = vpop.f32.mrf.mxu0
          %1766 = vmatprep.mubr.bf16.mxu0 0
          %1767 = vmatmul.mubr.bf16.gmra.mxu0 %v1617
          %v1768 = vpop.f32.mrf.mxu0
          %v1769 = vadd.f32 %v1629, %v1768
          %v1770 = vpop.f32.mrf.mxu0
          %v1771 = vpop.f32.mrf.mxu0
          %v1772 = vadd.f32 %v1629, %v1771
          %v1773 = vpop.f32.mrf.mxu0
          %1774 = vmatprep.mubr.bf16.mxu0 0
          %1775 = vmatmul.mubr.bf16.gmra.mxu0 %v1618
          %v1776 = vpop.f32.mrf.mxu0
          %v1777 = vadd.f32 %v1629, %v1776
          %v1778 = vpop.f32.mrf.mxu0
          %v1779 = vpop.f32.mrf.mxu0
          %v1780 = vadd.f32 %v1629, %v1779
          %v1781 = vpop.f32.mrf.mxu0
          %1782 = vmatprep.mubr.bf16.mxu0 0
          %1783 = vmatmul.mubr.bf16.gmra.mxu0 %v1619
          %v1784 = vpop.f32.mrf.mxu0
          %v1785 = vadd.f32 %v1629, %v1784
          %v1786 = vpop.f32.mrf.mxu0
          %v1787 = vpop.f32.mrf.mxu0
          %v1788 = vadd.f32 %v1629, %v1787
          %v1789 = vpop.f32.mrf.mxu0
          %1790 = vmatprep.mubr.bf16.mxu0 0
          %1791 = vmatmul.mubr.bf16.gmra.mxu0 %v1620
          %v1792 = vpop.f32.mrf.mxu0
          %v1793 = vadd.f32 %v1629, %v1792
          %v1794 = vpop.f32.mrf.mxu0
          %v1795 = vpop.f32.mrf.mxu0
          %v1796 = vadd.f32 %v1629, %v1795
          %v1797 = vpop.f32.mrf.mxu0
          %1798 = vmatprep.mubr.bf16.mxu0 0
          %1799 = vmatmul.mubr.bf16.gmra.mxu0 %v1621
          %v1800 = vpop.f32.mrf.mxu0
          %v1801 = vadd.f32 %v1629, %v1800
          %v1802 = vpop.f32.mrf.mxu0
          %v1803 = vpop.f32.mrf.mxu0
          %v1804 = vadd.f32 %v1629, %v1803
          %v1805 = vpop.f32.mrf.mxu0
          %1806 = vmatprep.mubr.bf16.mxu0 0
          %1807 = vmatmul.mubr.bf16.gmra.mxu0 %v1622
          %v1808 = vpop.f32.mrf.mxu0
          %v1809 = vadd.f32 %v1629, %v1808
          %v1810 = vpop.f32.mrf.mxu0
          %v1811 = vpop.f32.mrf.mxu0
          %v1812 = vadd.f32 %v1629, %v1811
          %v1813 = vpop.f32.mrf.mxu0
          %1814 = vmatprep.mubr.bf16.mxu0 0
          %1815 = vmatmul.mubr.bf16.gmra.mxu0 %v1623
          %v1816 = vpop.f32.mrf.mxu0
          %v1817 = vadd.f32 %v1629, %v1816
          %v1818 = vpop.f32.mrf.mxu0
          %v1819 = vpop.f32.mrf.mxu0
          %v1820 = vadd.f32 %v1629, %v1819
          %v1821 = vpop.f32.mrf.mxu0
          %1822 = vmatprep.mubr.bf16.mxu0 0
          %1823 = vmatmul.mubr.bf16.gmra.mxu0 %v1624
          %v1824 = vpop.f32.mrf.mxu0
          %v1825 = vadd.f32 %v1629, %v1824
          %v1826 = vpop.f32.mrf.mxu0
          %v1827 = vpop.f32.mrf.mxu0
          %v1828 = vadd.f32 %v1629, %v1827
          %v1829 = vpop.f32.mrf.mxu0
          %1830 = vmatprep.mubr.bf16.mxu0 0
          %1831 = vmatmul.mubr.bf16.gmra.mxu0 %v1625
          %v1832 = vpop.f32.mrf.mxu0
          %v1833 = vadd.f32 %v1629, %v1832
          %v1834 = vpop.f32.mrf.mxu0
          %v1835 = vpop.f32.mrf.mxu0
          %v1836 = vadd.f32 %v1629, %v1835
          %v1837 = vpop.f32.mrf.mxu0
          %1838 = vdwg.mxu0
          %v1839 = vld [vmem:[%s295 + $0x4] sm:$0x1]
          %v1840 = vld [vmem:[%s295 + $0x5] sm:$0x1]
          %v1841 = vmul.f32 %v1713, %v1185
          %v1842 = vmul.f32 %v1716, %v1186
          %v1843 = vmul.f32 %v1721, %v1187
          %v1844 = vmul.f32 %v1724, %v1188
          %v1845 = vmul.f32 %v1729, %v1189
          %v1846 = vmul.f32 %v1732, %v1190
          %v1847 = vmul.f32 %v1737, %v1191
          %v1848 = vmul.f32 %v1740, %v1192
          %v1849 = vmul.f32 %v1745, %v1193
          %v1850 = vmul.f32 %v1748, %v1194
          %v1851 = vmul.f32 %v1753, %v1195
          %v1852 = vmul.f32 %v1756, %v1196
          %v1853 = vmul.f32 %v1761, %v1197
          %v1854 = vmul.f32 %v1764, %v1198
          %v1855 = vmul.f32 %v1769, %v1199
          %v1856 = vmul.f32 %v1772, %v1200
          %v1857 = vmul.f32 %v1777, %v1201
          %v1858 = vmul.f32 %v1780, %v1202
          %v1859 = vmul.f32 %v1785, %v1203
          %v1860 = vmul.f32 %v1788, %v1204
          %v1861 = vmul.f32 %v1793, %v1205
          %v1862 = vmul.f32 %v1796, %v1206
          %v1863 = vmul.f32 %v1801, %v1207
          %v1864 = vmul.f32 %v1804, %v1208
          %v1865 = vmul.f32 %v1809, %v1209
          %v1866 = vmul.f32 %v1812, %v1210
          %v1867 = vmul.f32 %v1817, %v1211
          %v1868 = vmul.f32 %v1820, %v1212
          %v1869 = vmul.f32 %v1825, %v1213
          %v1870 = vmul.f32 %v1828, %v1214
          %v1871 = vmul.f32 %v1833, %v1215
          %v1872 = vmul.f32 %v1836, %v1216
          %v1873 = vadd.f32 %v1841, %v1842
          %v1874 = vadd.f32 %v1873, %v1843
          %v1875 = vadd.f32 %v1874, %v1844
          %v1876 = vadd.f32 %v1875, %v1845
          %v1877 = vadd.f32 %v1876, %v1846
          %v1878 = vadd.f32 %v1877, %v1847
          %v1879 = vadd.f32 %v1878, %v1848
          %v1880 = vadd.f32 %v1879, %v1849
          %v1881 = vadd.f32 %v1880, %v1850
          %v1882 = vadd.f32 %v1881, %v1851
          %v1883 = vadd.f32 %v1882, %v1852
          %v1884 = vadd.f32 %v1883, %v1853
          %v1885 = vadd.f32 %v1884, %v1854
          %v1886 = vadd.f32 %v1885, %v1855
          %v1887 = vadd.f32 %v1886, %v1856
          %v1888 = vadd.f32 %v1887, %v1857
          %v1889 = vadd.f32 %v1888, %v1858
          %v1890 = vadd.f32 %v1889, %v1859
          %v1891 = vadd.f32 %v1890, %v1860
          %v1892 = vadd.f32 %v1891, %v1861
          %v1893 = vadd.f32 %v1892, %v1862
          %v1894 = vadd.f32 %v1893, %v1863
          %v1895 = vadd.f32 %v1894, %v1864
          %v1896 = vadd.f32 %v1895, %v1865
          %v1897 = vadd.f32 %v1896, %v1866
          %v1898 = vadd.f32 %v1897, %v1867
          %v1899 = vadd.f32 %v1898, %v1868
          %v1900 = vadd.f32 %v1899, %v1869
          %v1901 = vadd.f32 %v1900, %v1870
          %v1902 = vadd.f32 %v1901, %v1871
          %v1903 = vadd.f32 %v1902, %v1872
          %v1904 = vrot.slane %v1903, 4
          %v1905 = vadd.f32 %v1903, %v1904
          %v1906 = vrot.slane %v1905, 2
          %v1907 = vadd.f32 %v1905, %v1906
          %v1908 = vrot.slane %v1907, 1
          %v1909 = vadd.f32 %v1907, %v1908
          %v1910 = vmul.f32 %v1909, 0.005
          %v1911 = vsub.f32 %v1713, %v1910
          %v1912 = vsub.f32 %v1716, %v1910
          %v1913 = vsub.f32 %v1721, %v1910
          %v1914 = vsub.f32 %v1724, %v1910
          %v1915 = vsub.f32 %v1729, %v1910
          %v1916 = vsub.f32 %v1732, %v1910
          %v1917 = vsub.f32 %v1737, %v1910
          %v1918 = vsub.f32 %v1740, %v1910
          %v1919 = vsub.f32 %v1745, %v1910
          %v1920 = vsub.f32 %v1748, %v1910
          %v1921 = vsub.f32 %v1753, %v1910
          %v1922 = vsub.f32 %v1756, %v1910
          %v1923 = vsub.f32 %v1761, %v1910
          %v1924 = vsub.f32 %v1764, %v1910
          %v1925 = vsub.f32 %v1769, %v1910
          %v1926 = vsub.f32 %v1772, %v1910
          %v1927 = vsub.f32 %v1777, %v1910
          %v1928 = vsub.f32 %v1780, %v1910
          %v1929 = vsub.f32 %v1785, %v1910
          %v1930 = vsub.f32 %v1788, %v1910
          %v1931 = vsub.f32 %v1793, %v1910
          %v1932 = vsub.f32 %v1796, %v1910
          %v1933 = vsub.f32 %v1801, %v1910
          %v1934 = vsub.f32 %v1804, %v1910
          %v1935 = vsub.f32 %v1809, %v1910
          %v1936 = vsub.f32 %v1812, %v1910
          %v1937 = vsub.f32 %v1817, %v1910
          %v1938 = vsub.f32 %v1820, %v1910
          %v1939 = vsub.f32 %v1825, %v1910
          %v1940 = vsub.f32 %v1828, %v1910
          %v1941 = vsub.f32 %v1833, %v1910
          %v1942 = vsub.f32 %v1836, %v1910
          %v1943 = vmul.f32 %v1911, %v1185
          %v1944 = vmul.f32 %v1912, %v1186
          %v1945 = vmul.f32 %v1913, %v1187
          %v1946 = vmul.f32 %v1914, %v1188
          %v1947 = vmul.f32 %v1915, %v1189
          %v1948 = vmul.f32 %v1916, %v1190
          %v1949 = vmul.f32 %v1917, %v1191
          %v1950 = vmul.f32 %v1918, %v1192
          %v1951 = vmul.f32 %v1919, %v1193
          %v1952 = vmul.f32 %v1920, %v1194
          %v1953 = vmul.f32 %v1921, %v1195
          %v1954 = vmul.f32 %v1922, %v1196
          %v1955 = vmul.f32 %v1923, %v1197
          %v1956 = vmul.f32 %v1924, %v1198
          %v1957 = vmul.f32 %v1925, %v1199
          %v1958 = vmul.f32 %v1926, %v1200
          %v1959 = vmul.f32 %v1927, %v1201
          %v1960 = vmul.f32 %v1928, %v1202
          %v1961 = vmul.f32 %v1929, %v1203
          %v1962 = vmul.f32 %v1930, %v1204
          %v1963 = vmul.f32 %v1931, %v1205
          %v1964 = vmul.f32 %v1932, %v1206
          %v1965 = vmul.f32 %v1933, %v1207
          %v1966 = vmul.f32 %v1934, %v1208
          %v1967 = vmul.f32 %v1935, %v1209
          %v1968 = vmul.f32 %v1936, %v1210
          %v1969 = vmul.f32 %v1937, %v1211
          %v1970 = vmul.f32 %v1938, %v1212
          %v1971 = vmul.f32 %v1939, %v1213
          %v1972 = vmul.f32 %v1940, %v1214
          %v1973 = vmul.f32 %v1941, %v1215
          %v1974 = vmul.f32 %v1942, %v1216
          %v1975 = vmul.f32 %v1943, %v1943
          %v1976 = vmul.f32 %v1944, %v1944
          %v1977 = vmul.f32 %v1945, %v1945
          %v1978 = vmul.f32 %v1946, %v1946
          %v1979 = vmul.f32 %v1947, %v1947
          %v1980 = vmul.f32 %v1948, %v1948
          %v1981 = vmul.f32 %v1949, %v1949
          %v1982 = vmul.f32 %v1950, %v1950
          %v1983 = vmul.f32 %v1951, %v1951
          %v1984 = vmul.f32 %v1952, %v1952
          %v1985 = vmul.f32 %v1953, %v1953
          %v1986 = vmul.f32 %v1954, %v1954
          %v1987 = vmul.f32 %v1955, %v1955
          %v1988 = vmul.f32 %v1956, %v1956
          %v1989 = vmul.f32 %v1957, %v1957
          %v1990 = vmul.f32 %v1958, %v1958
          %v1991 = vmul.f32 %v1959, %v1959
          %v1992 = vmul.f32 %v1960, %v1960
          %v1993 = vmul.f32 %v1961, %v1961
          %v1994 = vmul.f32 %v1962, %v1962
          %v1995 = vmul.f32 %v1963, %v1963
          %v1996 = vmul.f32 %v1964, %v1964
          %v1997 = vmul.f32 %v1965, %v1965
          %v1998 = vmul.f32 %v1966, %v1966
          %v1999 = vmul.f32 %v1967, %v1967
          %v2000 = vmul.f32 %v1968, %v1968
          %v2001 = vmul.f32 %v1969, %v1969
          %v2002 = vmul.f32 %v1970, %v1970
          %v2003 = vmul.f32 %v1971, %v1971
          %v2004 = vmul.f32 %v1972, %v1972
          %v2005 = vmul.f32 %v1973, %v1973
          %v2006 = vmul.f32 %v1974, %v1974
          %v2007 = vadd.f32 %v1975, %v1976
          %v2008 = vadd.f32 %v2007, %v1977
          %v2009 = vadd.f32 %v2008, %v1978
          %v2010 = vadd.f32 %v2009, %v1979
          %v2011 = vadd.f32 %v2010, %v1980
          %v2012 = vadd.f32 %v2011, %v1981
          %v2013 = vadd.f32 %v2012, %v1982
          %v2014 = vadd.f32 %v2013, %v1983
          %v2015 = vadd.f32 %v2014, %v1984
          %v2016 = vadd.f32 %v2015, %v1985
          %v2017 = vadd.f32 %v2016, %v1986
          %v2018 = vadd.f32 %v2017, %v1987
          %v2019 = vadd.f32 %v2018, %v1988
          %v2020 = vadd.f32 %v2019, %v1989
          %v2021 = vadd.f32 %v2020, %v1990
          %v2022 = vadd.f32 %v2021, %v1991
          %v2023 = vadd.f32 %v2022, %v1992
          %v2024 = vadd.f32 %v2023, %v1993
          %v2025 = vadd.f32 %v2024, %v1994
          %v2026 = vadd.f32 %v2025, %v1995
          %v2027 = vadd.f32 %v2026, %v1996
          %v2028 = vadd.f32 %v2027, %v1997
          %v2029 = vadd.f32 %v2028, %v1998
          %v2030 = vadd.f32 %v2029, %v1999
          %v2031 = vadd.f32 %v2030, %v2000
          %v2032 = vadd.f32 %v2031, %v2001
          %v2033 = vadd.f32 %v2032, %v2002
          %v2034 = vadd.f32 %v2033, %v2003
          %v2035 = vadd.f32 %v2034, %v2004
          %v2036 = vadd.f32 %v2035, %v2005
          %v2037 = vadd.f32 %v2036, %v2006
          %v2038 = vrot.slane %v2037, 4
          %v2039 = vadd.f32 %v2037, %v2038
          %v2040 = vrot.slane %v2039, 2
          %v2041 = vadd.f32 %v2039, %v2040
          %v2042 = vrot.slane %v2041, 1
          %v2043 = vadd.f32 %v2041, %v2042
          %v2044 = vmul.f32 %v2043, 0.005
          %v2045 = vadd.f32 %v2044, 1e-05
          %v2046 = vrsqrt.pop %v2045
          %v2047 = vmul.f32 %v1911, %v2046
          %v2048 = vmul.f32 %v1912, %v2046
          %v2049 = vmul.f32 %v1913, %v2046
          %v2050 = vmul.f32 %v1914, %v2046
          %v2051 = vmul.f32 %v1915, %v2046
          %v2052 = vmul.f32 %v1916, %v2046
          %v2053 = vmul.f32 %v1917, %v2046
          %v2054 = vmul.f32 %v1918, %v2046
          %v2055 = vmul.f32 %v1919, %v2046
          %v2056 = vmul.f32 %v1920, %v2046
          %v2057 = vmul.f32 %v1921, %v2046
          %v2058 = vmul.f32 %v1922, %v2046
          %v2059 = vmul.f32 %v1923, %v2046
          %v2060 = vmul.f32 %v1924, %v2046
          %v2061 = vmul.f32 %v1925, %v2046
          %v2062 = vmul.f32 %v1926, %v2046
          %v2063 = vmul.f32 %v1927, %v2046
          %v2064 = vmul.f32 %v1928, %v2046
          %v2065 = vmul.f32 %v1929, %v2046
          %v2066 = vmul.f32 %v1930, %v2046
          %v2067 = vmul.f32 %v1931, %v2046
          %v2068 = vmul.f32 %v1932, %v2046
          %v2069 = vmul.f32 %v1933, %v2046
          %v2070 = vmul.f32 %v1934, %v2046
          %v2071 = vmul.f32 %v1935, %v2046
          %v2072 = vmul.f32 %v1936, %v2046
          %v2073 = vmul.f32 %v1937, %v2046
          %v2074 = vmul.f32 %v1938, %v2046
          %v2075 = vmul.f32 %v1939, %v2046
          %v2076 = vmul.f32 %v1940, %v2046
          %v2077 = vmul.f32 %v1941, %v2046
          %v2078 = vmul.f32 %v1942, %v2046
          %v2079 = vlaneseq
          %v2080 = vshrl.u32 %v2079, 7
          %v2081 = vsub.s32 0, %v2080
          %v2082 = vrot.slane %v1839, %v2081
          %v2083 = vmul.f32 %v2047, %v2082
          %v2084 = vmul.f32 %v2048, %v2082
          %v2085 = vmul.f32 %v2049, %v2082
          %v2086 = vmul.f32 %v2050, %v2082
          %v2087 = vmul.f32 %v2051, %v2082
          %v2088 = vmul.f32 %v2052, %v2082
          %v2089 = vmul.f32 %v2053, %v2082
          %v2090 = vmul.f32 %v2054, %v2082
          %v2091 = vmul.f32 %v2055, %v2082
          %v2092 = vmul.f32 %v2056, %v2082
          %v2093 = vmul.f32 %v2057, %v2082
          %v2094 = vmul.f32 %v2058, %v2082
          %v2095 = vmul.f32 %v2059, %v2082
          %v2096 = vmul.f32 %v2060, %v2082
          %v2097 = vmul.f32 %v2061, %v2082
          %v2098 = vmul.f32 %v2062, %v2082
          %v2099 = vmul.f32 %v2063, %v2082
          %v2100 = vmul.f32 %v2064, %v2082
          %v2101 = vmul.f32 %v2065, %v2082
          %v2102 = vmul.f32 %v2066, %v2082
          %v2103 = vmul.f32 %v2067, %v2082
          %v2104 = vmul.f32 %v2068, %v2082
          %v2105 = vmul.f32 %v2069, %v2082
          %v2106 = vmul.f32 %v2070, %v2082
          %v2107 = vmul.f32 %v2071, %v2082
          %v2108 = vmul.f32 %v2072, %v2082
          %v2109 = vmul.f32 %v2073, %v2082
          %v2110 = vmul.f32 %v2074, %v2082
          %v2111 = vmul.f32 %v2075, %v2082
          %v2112 = vmul.f32 %v2076, %v2082
          %v2113 = vmul.f32 %v2077, %v2082
          %v2114 = vmul.f32 %v2078, %v2082
          %v2115 = vlaneseq
          %v2116 = vshrl.u32 %v2115, 7
          %v2117 = vsub.s32 0, %v2116
          %v2118 = vrot.slane %v1840, %v2117
          %v2119 = vadd.f32 %v2083, %v2118
          %v2120 = vadd.f32 %v2084, %v2118
          %v2121 = vadd.f32 %v2085, %v2118
          %v2122 = vadd.f32 %v2086, %v2118
          %v2123 = vadd.f32 %v2087, %v2118
          %v2124 = vadd.f32 %v2088, %v2118
          %v2125 = vadd.f32 %v2089, %v2118
          %v2126 = vadd.f32 %v2090, %v2118
          %v2127 = vadd.f32 %v2091, %v2118
          %v2128 = vadd.f32 %v2092, %v2118
          %v2129 = vadd.f32 %v2093, %v2118
          %v2130 = vadd.f32 %v2094, %v2118
          %v2131 = vadd.f32 %v2095, %v2118
          %v2132 = vadd.f32 %v2096, %v2118
          %v2133 = vadd.f32 %v2097, %v2118
          %v2134 = vadd.f32 %v2098, %v2118
          %v2135 = vadd.f32 %v2099, %v2118
          %v2136 = vadd.f32 %v2100, %v2118
          %v2137 = vadd.f32 %v2101, %v2118
          %v2138 = vadd.f32 %v2102, %v2118
          %v2139 = vadd.f32 %v2103, %v2118
          %v2140 = vadd.f32 %v2104, %v2118
          %v2141 = vadd.f32 %v2105, %v2118
          %v2142 = vadd.f32 %v2106, %v2118
          %v2143 = vadd.f32 %v2107, %v2118
          %v2144 = vadd.f32 %v2108, %v2118
          %v2145 = vadd.f32 %v2109, %v2118
          %v2146 = vadd.f32 %v2110, %v2118
          %v2147 = vadd.f32 %v2111, %v2118
          %v2148 = vadd.f32 %v2112, %v2118
          %v2149 = vadd.f32 %v2113, %v2118
          %v2150 = vadd.f32 %v2114, %v2118
          %v2151 = vmax.f32 %v2119, 0.0
          %v2152 = vmax.f32 %v2120, 0.0
          %v2153 = vmax.f32 %v2121, 0.0
          %v2154 = vmax.f32 %v2122, 0.0
          %v2155 = vmax.f32 %v2123, 0.0
          %v2156 = vmax.f32 %v2124, 0.0
          %v2157 = vmax.f32 %v2125, 0.0
          %v2158 = vmax.f32 %v2126, 0.0
          %v2159 = vmax.f32 %v2127, 0.0
          %v2160 = vmax.f32 %v2128, 0.0
          %v2161 = vmax.f32 %v2129, 0.0
          %v2162 = vmax.f32 %v2130, 0.0
          %v2163 = vmax.f32 %v2131, 0.0
          %v2164 = vmax.f32 %v2132, 0.0
          %v2165 = vmax.f32 %v2133, 0.0
          %v2166 = vmax.f32 %v2134, 0.0
          %v2167 = vmax.f32 %v2135, 0.0
          %v2168 = vmax.f32 %v2136, 0.0
          %v2169 = vmax.f32 %v2137, 0.0
          %v2170 = vmax.f32 %v2138, 0.0
          %v2171 = vmax.f32 %v2139, 0.0
          %v2172 = vmax.f32 %v2140, 0.0
          %v2173 = vmax.f32 %v2141, 0.0
          %v2174 = vmax.f32 %v2142, 0.0
          %v2175 = vmax.f32 %v2143, 0.0
          %v2176 = vmax.f32 %v2144, 0.0
          %v2177 = vmax.f32 %v2145, 0.0
          %v2178 = vmax.f32 %v2146, 0.0
          %v2179 = vmax.f32 %v2147, 0.0
          %v2180 = vmax.f32 %v2148, 0.0
          %v2181 = vmax.f32 %v2149, 0.0
          %v2182 = vmax.f32 %v2150, 0.0
          %v2183 = vpack.c.bf16 %v2152, %v2151
          %v2184 = vpack.c.bf16 %v2154, %v2153
          %v2185 = vpack.c.bf16 %v2156, %v2155
          %v2186 = vpack.c.bf16 %v2158, %v2157
          %v2187 = vpack.c.bf16 %v2160, %v2159
          %v2188 = vpack.c.bf16 %v2162, %v2161
          %v2189 = vpack.c.bf16 %v2164, %v2163
          %v2190 = vpack.c.bf16 %v2166, %v2165
          %v2191 = vpack.c.bf16 %v2168, %v2167
          %v2192 = vpack.c.bf16 %v2170, %v2169
          %v2193 = vpack.c.bf16 %v2172, %v2171
          %v2194 = vpack.c.bf16 %v2174, %v2173
          %v2195 = vpack.c.bf16 %v2176, %v2175
          %v2196 = vpack.c.bf16 %v2178, %v2177
          %v2197 = vpack.c.bf16 %v2180, %v2179
          %v2198 = vpack.c.bf16 %v2182, %v2181
          %v2215 = vunpack.c.l.b16 %v2183
          %v2216 = vunpack.c.h.b16 %v2183
          %v2217 = vunpack.c.l.b16 %v2184
          %v2218 = vunpack.c.h.b16 %v2184
          %v2219 = vunpack.c.l.b16 %v2185
          %v2220 = vunpack.c.h.b16 %v2185
          %v2221 = vunpack.c.l.b16 %v2186
          %v2222 = vunpack.c.h.b16 %v2186
          %v2223 = vunpack.c.l.b16 %v2187
          %v2224 = vunpack.c.h.b16 %v2187
          %v2225 = vunpack.c.l.b16 %v2188
          %v2226 = vunpack.c.h.b16 %v2188
          %v2227 = vunpack.c.l.b16 %v2189
          %v2228 = vunpack.c.h.b16 %v2189
          %v2229 = vunpack.c.l.b16 %v2190
          %v2230 = vunpack.c.h.b16 %v2190
          %v2231 = vunpack.c.l.b16 %v2191
          %v2232 = vunpack.c.h.b16 %v2191
          %v2233 = vunpack.c.l.b16 %v2192
          %v2234 = vunpack.c.h.b16 %v2192
          %v2235 = vunpack.c.l.b16 %v2193
          %v2236 = vunpack.c.h.b16 %v2193
          %v2237 = vunpack.c.l.b16 %v2194
          %v2238 = vunpack.c.h.b16 %v2194
          %v2239 = vunpack.c.l.b16 %v2195
          %v2240 = vunpack.c.h.b16 %v2195
          %v2241 = vunpack.c.l.b16 %v2196
          %v2242 = vunpack.c.h.b16 %v2196
          %v2243 = vunpack.c.l.b16 %v2197
          %v2244 = vunpack.c.h.b16 %v2197
          %v2245 = vunpack.c.l.b16 %v2198
          %v2246 = vunpack.c.h.b16 %v2198
          %v2247 = vpack.c.b16 %v2215, %v2215
          %v2248 = vpack.c.b16 %v2216, %v2216
          %v2249 = vpack.c.b16 %v2217, %v2217
          %v2250 = vpack.c.b16 %v2218, %v2218
          %v2251 = vpack.c.b16 %v2219, %v2219
          %v2252 = vpack.c.b16 %v2220, %v2220
          %v2253 = vpack.c.b16 %v2221, %v2221
          %v2254 = vpack.c.b16 %v2222, %v2222
          %v2255 = vpack.c.b16 %v2223, %v2223
          %v2256 = vpack.c.b16 %v2224, %v2224
          %v2257 = vpack.c.b16 %v2225, %v2225
          %v2258 = vpack.c.b16 %v2226, %v2226
          %v2259 = vpack.c.b16 %v2227, %v2227
          %v2260 = vpack.c.b16 %v2228, %v2228
          %v2261 = vpack.c.b16 %v2229, %v2229
          %v2262 = vpack.c.b16 %v2230, %v2230
          %v2263 = vpack.c.b16 %v2231, %v2231
          %v2264 = vpack.c.b16 %v2232, %v2232
          %v2265 = vpack.c.b16 %v2233, %v2233
          %v2266 = vpack.c.b16 %v2234, %v2234
          %v2267 = vpack.c.b16 %v2235, %v2235
          %v2268 = vpack.c.b16 %v2236, %v2236
          %v2269 = vpack.c.b16 %v2237, %v2237
          %v2270 = vpack.c.b16 %v2238, %v2238
          %v2271 = vpack.c.b16 %v2239, %v2239
          %v2272 = vpack.c.b16 %v2240, %v2240
          %v2273 = vpack.c.b16 %v2241, %v2241
          %v2274 = vpack.c.b16 %v2242, %v2242
          %v2275 = vpack.c.b16 %v2243, %v2243
          %v2276 = vpack.c.b16 %v2244, %v2244
          %v2277 = vpack.c.b16 %v2245, %v2245
          %v2278 = vpack.c.b16 %v2246, %v2246
          %2311 = vst [vmem:[#allocation2] sm:$0xf] %v2247
          %2312 = vst [vmem:[#allocation2 + $0x4] sm:$0xf] %v2248
          %2313 = vst [vmem:[#allocation2 + $0x8] sm:$0xf] %v2249
          %2314 = vst [vmem:[#allocation2 + $0xc] sm:$0xf] %v2250
          %2315 = vst [vmem:[#allocation2 + $0x10] sm:$0xf] %v2251
          %2316 = vst [vmem:[#allocation2 + $0x14] sm:$0xf] %v2252
          %2317 = vst [vmem:[#allocation2 + $0x18] sm:$0xf] %v2253
          %2318 = vst [vmem:[#allocation2 + $0x1c] sm:$0xf] %v2254
          %2319 = vst [vmem:[#allocation2 + $0x20] sm:$0xf] %v2255
          %2320 = vst [vmem:[#allocation2 + $0x24] sm:$0xf] %v2256
          %2321 = vst [vmem:[#allocation2 + $0x28] sm:$0xf] %v2257
          %2322 = vst [vmem:[#allocation2 + $0x2c] sm:$0xf] %v2258
          %2323 = vst [vmem:[#allocation2 + $0x30] sm:$0xf] %v2259
          %2324 = vst [vmem:[#allocation2 + $0x34] sm:$0xf] %v2260
          %2325 = vst [vmem:[#allocation2 + $0x38] sm:$0xf] %v2261
          %2326 = vst [vmem:[#allocation2 + $0x3c] sm:$0xf] %v2262
          %2327 = vst [vmem:[#allocation2 + $0x40] sm:$0xf] %v2263
          %2328 = vst [vmem:[#allocation2 + $0x44] sm:$0xf] %v2264
          %2329 = vst [vmem:[#allocation2 + $0x48] sm:$0xf] %v2265
          %2330 = vst [vmem:[#allocation2 + $0x4c] sm:$0xf] %v2266
          %2331 = vst [vmem:[#allocation2 + $0x50] sm:$0xf] %v2267
          %2332 = vst [vmem:[#allocation2 + $0x54] sm:$0xf] %v2268
          %2333 = vst [vmem:[#allocation2 + $0x58] sm:$0xf] %v2269
          %2334 = vst [vmem:[#allocation2 + $0x5c] sm:$0xf] %v2270
          %2335 = vst [vmem:[#allocation2 + $0x60] sm:$0xf] %v2271
          %2336 = vst [vmem:[#allocation2 + $0x64] sm:$0xf] %v2272
          %2337 = vst [vmem:[#allocation2 + $0x68] sm:$0xf] %v2273
          %2338 = vst [vmem:[#allocation2 + $0x6c] sm:$0xf] %v2274
          %2339 = vst [vmem:[#allocation2 + $0x70] sm:$0xf] %v2275
          %2340 = vst [vmem:[#allocation2 + $0x74] sm:$0xf] %v2276
          %2341 = vst [vmem:[#allocation2 + $0x78] sm:$0xf] %v2277
          %2342 = vst [vmem:[#allocation2 + $0x7c] sm:$0xf] %v2278
          %p2343 = scmp.eq.s32.totalorder %s30, 1
          // Predicated region
          $region58: #{tpu_custom_call.1} parent=56 // pred_check
            %p2344 = pneg %p2343
          $region59: #{tpu_custom_call.1} parent=56 // pred_check_branch
            %2346 = sbr.rel (%p2344) target = $region61
          $region60: #{tpu_custom_call.1} parent=56 // pred_region
            %v2347 = vmul.f32 %v2151, %v1185
            %v2348 = vmul.f32 %v2152, %v1186
            %v2349 = vmul.f32 %v2153, %v1187
            %v2350 = vmul.f32 %v2154, %v1188
            %v2351 = vmul.f32 %v2155, %v1189
            %v2352 = vmul.f32 %v2156, %v1190
            %v2353 = vmul.f32 %v2157, %v1191
            %v2354 = vmul.f32 %v2158, %v1192
            %v2355 = vmul.f32 %v2159, %v1193
            %v2356 = vmul.f32 %v2160, %v1194
            %v2357 = vmul.f32 %v2161, %v1195
            %v2358 = vmul.f32 %v2162, %v1196
            %v2359 = vmul.f32 %v2163, %v1197
            %v2360 = vmul.f32 %v2164, %v1198
            %v2361 = vmul.f32 %v2165, %v1199
            %v2362 = vmul.f32 %v2166, %v1200
            %v2363 = vmul.f32 %v2167, %v1201
            %v2364 = vmul.f32 %v2168, %v1202
            %v2365 = vmul.f32 %v2169, %v1203
            %v2366 = vmul.f32 %v2170, %v1204
            %v2367 = vmul.f32 %v2171, %v1205
            %v2368 = vmul.f32 %v2172, %v1206
            %v2369 = vmul.f32 %v2173, %v1207
            %v2370 = vmul.f32 %v2174, %v1208
            %v2371 = vmul.f32 %v2175, %v1209
            %v2372 = vmul.f32 %v2176, %v1210
            %v2373 = vmul.f32 %v2177, %v1211
            %v2374 = vmul.f32 %v2178, %v1212
            %v2375 = vmul.f32 %v2179, %v1213
            %v2376 = vmul.f32 %v2180, %v1214
            %v2377 = vmul.f32 %v2181, %v1215
            %v2378 = vmul.f32 %v2182, %v1216
            %2379 = vst [vmem:[#allocation12] sm:$0xff] %v2347
            %2380 = vst [vmem:[#allocation12 + $0x8] sm:$0xff] %v2348
            %2381 = vst [vmem:[#allocation12 + $0x10] sm:$0xff] %v2349
            %2382 = vst [vmem:[#allocation12 + $0x18] sm:$0xff] %v2350
            %2383 = vst [vmem:[#allocation12 + $0x20] sm:$0xff] %v2351
            %2384 = vst [vmem:[#allocation12 + $0x28] sm:$0xff] %v2352
            %2385 = vst [vmem:[#allocation12 + $0x30] sm:$0xff] %v2353
            %2386 = vst [vmem:[#allocation12 + $0x38] sm:$0xff] %v2354
            %2387 = vst [vmem:[#allocation12 + $0x40] sm:$0xff] %v2355
            %2388 = vst [vmem:[#allocation12 + $0x48] sm:$0xff] %v2356
            %2389 = vst [vmem:[#allocation12 + $0x50] sm:$0xff] %v2357
            %2390 = vst [vmem:[#allocation12 + $0x58] sm:$0xff] %v2358
            %2391 = vst [vmem:[#allocation12 + $0x60] sm:$0xff] %v2359
            %2392 = vst [vmem:[#allocation12 + $0x68] sm:$0xff] %v2360
            %2393 = vst [vmem:[#allocation12 + $0x70] sm:$0xff] %v2361
            %2394 = vst [vmem:[#allocation12 + $0x78] sm:$0xff] %v2362
            %2395 = vst [vmem:[#allocation12 + $0x80] sm:$0xff] %v2363
            %2396 = vst [vmem:[#allocation12 + $0x88] sm:$0xff] %v2364
            %2397 = vst [vmem:[#allocation12 + $0x90] sm:$0xff] %v2365
            %2398 = vst [vmem:[#allocation12 + $0x98] sm:$0xff] %v2366
            %2399 = vst [vmem:[#allocation12 + $0xa0] sm:$0xff] %v2367
            %2400 = vst [vmem:[#allocation12 + $0xa8] sm:$0xff] %v2368
            %2401 = vst [vmem:[#allocation12 + $0xb0] sm:$0xff] %v2369
            %2402 = vst [vmem:[#allocation12 + $0xb8] sm:$0xff] %v2370
            %2403 = vst [vmem:[#allocation12 + $0xc0] sm:$0xff] %v2371
            %2404 = vst [vmem:[#allocation12 + $0xc8] sm:$0xff] %v2372
            %2405 = vst [vmem:[#allocation12 + $0xd0] sm:$0xff] %v2373
            %2406 = vst [vmem:[#allocation12 + $0xd8] sm:$0xff] %v2374
            %2407 = vst [vmem:[#allocation12 + $0xe0] sm:$0xff] %v2375
            %2408 = vst [vmem:[#allocation12 + $0xe8] sm:$0xff] %v2376
            %2409 = vst [vmem:[#allocation12 + $0xf0] sm:$0xff] %v2377
            %2410 = vst [vmem:[#allocation12 + $0xf8] sm:$0xff] %v2378
            %v2411 = vld [vmem:[%s5] sm:$0xff]
            %v2412 = vld [vmem:[%s5 + $0x8] sm:$0xff]
            %v2415 = vunpack.c.l.b16 %v2411
            %v2416 = vunpack.c.h.b16 %v2411
            %v2417 = vunpack.c.l.b16 %v2412
            %v2418 = vunpack.c.h.b16 %v2412
            %v2419 = vpack.c.b16 %v2417, %v2415
            %v2420 = vpack.c.b16 %v2418, %v2416
            %2423 = vmatprep.subr.bf16.mxu0 0
            %2424 = vmatpush1.bf16.msra.mxu0 %v2190
            %2425 = vmatprep.subr.bf16.mxu0 0
            %2426 = vmatpush1.bf16.msra.mxu0 %v2189
            %2427 = vmatprep.subr.bf16.mxu0 0
            %2428 = vmatpush1.bf16.msra.mxu0 %v2188
            %2429 = vmatprep.subr.bf16.mxu0 0
            %2430 = vmatpush1.bf16.msra.mxu0 %v2187
            %2431 = vmatprep.subr.bf16.mxu0 0
            %2432 = vmatpush1.bf16.msra.mxu0 %v2186
            %2433 = vmatprep.subr.bf16.mxu0 0
            %2434 = vmatpush1.bf16.msra.mxu0 %v2185
            %2435 = vmatprep.subr.bf16.mxu0 0
            %2436 = vmatpush1.bf16.msra.mxu0 %v2184
            %2437 = vmatprep.subr.bf16.mxu0 0
            %2438 = vmatpush1.bf16.msra.mxu0 %v2183
            %2439 = vmatprep.subr.bf16.mxu0 0
            %2440 = vmatpush2.bf16.msra.mxu0 %v2198
            %2441 = vmatprep.subr.bf16.mxu0 0
            %2442 = vmatpush2.bf16.msra.mxu0 %v2197
            %2443 = vmatprep.subr.bf16.mxu0 0
            %2444 = vmatpush2.bf16.msra.mxu0 %v2196
            %2445 = vmatprep.subr.bf16.mxu0 0
            %2446 = vmatpush2.bf16.msra.mxu0 %v2195
            %2447 = vmatprep.subr.bf16.mxu0 0
            %2448 = vmatpush2.bf16.msra.mxu0 %v2194
            %2449 = vmatprep.subr.bf16.mxu0 0
            %2450 = vmatpush2.bf16.msra.mxu0 %v2193
            %2451 = vmatprep.subr.bf16.mxu0 0
            %2452 = vmatpush2.bf16.msra.mxu0 %v2192
            %2453 = vmatprep.subr.bf16.mxu0 0
            %2454 = vmatpush2.bf16.msra.mxu0 %v2191
            %2455 = vmatprep.mubr.bf16.mxu0 %v2420
            %2456 = vmatmul.mubr.bf16.gmra.mxu0 %v2419
            %v2457 = vpop.f32.mrf.mxu0
            %v2458 = vadd.f32 0.0, %v2457
            %v2459 = vpop.f32.mrf.mxu0
            %v2460 = vpop.f32.mrf.mxu0
            %v2461 = vadd.f32 0.0, %v2460
            %v2462 = vpop.f32.mrf.mxu0
            %2463 = vdwg.mxu0
            %2464 = vst [vmem:[#allocation11] sm:$0xff] %v2458
            %2465 = vst [vmem:[#allocation11 + $0x8] sm:$0xff] %v2461
          $region61: #{tpu_custom_call.1} parent=56 // pred_fallthru
            _
        $region57: #{tpu_custom_call.1} parent=35 // pred_fallthru
          _
        // Predicated region
        $region62: #{tpu_custom_call.1} parent=35 // pred_check
          %p2466 = pneg %p154
        $region63: #{tpu_custom_call.1} parent=35 // pred_check_branch
          %2468 = sbr.rel (%p2466) target = $region65
        $region64: #{tpu_custom_call.1} parent=35 // pred_region
          %s2470 = ssub.s32 256, 256
          %2471 = vsyncadd [#allocation8], %s2470
          %s2472 = sshll.u32 [#allocation11], 4
          %s2473 = int_to_ptr.vmem [resolvable:$true] %s2472
          %2478 = dma.vmem_to_hbm [thread:$0]  %s2473, 256, %s6, [#allocation8], 128, 128, 8
        $region65: #{tpu_custom_call.1} parent=35 // pred_fallthru
          _
        // Predicated region
        $region66: #{tpu_custom_call.1} parent=35 // pred_check
          %p2479 = pneg %p175
        $region67: #{tpu_custom_call.1} parent=35 // pred_check_branch
          %2481 = sbr.rel (%p2479) target = $region69
        $region68: #{tpu_custom_call.1} parent=35 // pred_region
          %s2483 = ssub.s32 4096, 4096
          %2484 = vsyncadd [#allocation13], %s2483
          %s2485 = sshll.u32 [#allocation12], 4
          %s2486 = int_to_ptr.vmem [resolvable:$true] %s2485
          %2491 = dma.vmem_to_hbm [thread:$0]  %s2486, 4096, %s7, [#allocation13], 128, 128, 8
        $region69: #{tpu_custom_call.1} parent=35 // pred_fallthru
          _
        // Predicated region
        $region70: #{tpu_custom_call.1} parent=35 // pred_check
          %p2492 = pneg %p154
        $region71: #{tpu_custom_call.1} parent=35 // pred_check_branch
          %2494 = sbr.rel (%p2492) target = $region73
        $region72: #{tpu_custom_call.1} parent=35 // pred_region
          %2495 = dma.done [#allocation8], 256
        $region73: #{tpu_custom_call.1} parent=35 // pred_fallthru
          _
        // Predicated region
        $region74: #{tpu_custom_call.1} parent=35 // pred_check
          %p2496 = pneg %p175
        $region75: #{tpu_custom_call.1} parent=35 // pred_check_branch
          %2498 = sbr.rel (%p2496) target = $region77
        $region76: #{tpu_custom_call.1} parent=35 // pred_region
          %2499 = dma.done [#allocation13], 4096
        $region77: #{tpu_custom_call.1} parent=35 // pred_fallthru
          _
      $region36: #{tpu_custom_call.1} parent=5 // pred_fallthru
        _
      %p2500 = scmp.le.s32.totalorder 2, %s21
      // Predicated region
      $region78: #{tpu_custom_call.1} parent=5 // pred_check
        %p2501 = pneg %p2500
      $region79: #{tpu_custom_call.1} parent=5 // pred_check_branch
        %2503 = sbr.rel (%p2501) target = $region81
      $region80: #{tpu_custom_call.1} parent=5 // pred_region
        %s2504 = ssub.s32 %s21, 2
      $region81: #{tpu_custom_call.1} parent=5 // pred_fallthru
        _
    $region6: #{tpu_custom_call.1} parent=1 // loop_footer
      %s25 = sadd.s32 1, %s21
    $region7: #{tpu_custom_call.1} parent=1 // loop_footer_branch
      %20 = sbr.rel target = $region3
    $region8: #{tpu_custom_call.1} parent=1 // loop_exit
      _
    %2505 = vsyncpa [#allocation7], 1
    %s2506 = scalar_lea.sflag [#allocation7], 1
    %2507 = vsyncpa %s2506, 1
    %2508 = vsyncpa [#allocation10], 1
    %s2509 = scalar_lea.sflag [#allocation10], 1
    %2510 = vsyncpa %s2509, 1
    %2511 = vsyncpa [#allocation8], 1
    %s2512 = scalar_lea.sflag [#allocation8], 1
    %2513 = vsyncpa %s2512, 1
    %2514 = vsyncpa [#allocation13], 1

</llo_original>
